<compile_context>
chip_gen: v7x
topology: tpu7x:2x2x1
jax: 0.10.0
libtpu: 0.0.40
codegen_flags: <defaults>
</compile_context>

<pallas_src>
import numpy as np
import jax
import jax.numpy as jnp
from jax.experimental import pallas as pl
from jax.experimental.pallas import tpu as pltpu

# Small test-time hyper-params consistent with the module (original n_embd=1536;
# scaled down but kept a multiple of 128 for lane-dense blocks).
N_EMBD = 128
VOCAB = 256
BLOCK_SIZE = 16
N_LAYER = 2
LN_EPS = 1e-5   # nn.LayerNorm / F.layer_norm default


def _gelu(x):
    # TODO(synk): nn.GELU() is exact (erf); Mosaic has no reliable erf lowering, so the
    # tanh approximation is used (max abs deviation ~3e-4). The JAX reference matches it.
    c = 0.7978845608028654  # sqrt(2/pi)
    return 0.5 * x * (1.0 + jnp.tanh(c * (x + 0.044715 * x * x * x)))


def _layernorm(h, gamma, beta=None):
    mean = jnp.mean(h, axis=-1, keepdims=True)
    c = h - mean
    var = jnp.mean(c * c, axis=-1, keepdims=True)
    y = c * jax.lax.rsqrt(var + LN_EPS) * gamma
    return y if beta is None else y + beta


# ----------------------------------------------------------------------------
# Kernel 1: one fused fNetBlock over a tile of (tm) token rows.
# ----------------------------------------------------------------------------
def fnet_block_kernel(x_ref, cos_ref, g1_ref, b1_ref,
                      w1_ref, w2_ref, w3_ref, w4_ref, o_ref):
    x = x_ref[...]                                   # (tm, C) f32
    g1 = g1_ref[...]                                 # (1, C)
    b1 = b1_ref[...]                                 # (1, C)

    # FourierBlock: Re(FFT(x, dim=-1)) == x @ cos(2*pi*n*k/C). Only the cosine
    # matrix is read; the imaginary/sine path is never computed nor DMA'd.
    h = jnp.dot(x, cos_ref[...], preferred_element_type=jnp.float32)
    h = _layernorm(h, g1, b1)

    # FourierBlock.ff: Linear(bias=False) -> GELU -> Linear(bias=False); Dropout = id.
    h = jnp.dot(h, w1_ref[...], preferred_element_type=jnp.float32)
    h = _gelu(h)
    h = jnp.dot(h, w2_ref[...], preferred_element_type=jnp.float32)

    # The same nn.LayerNorm module is applied again in FourierBlock.forward.
    h = _layernorm(h, g1, b1)

    # fNetBlock.ff: Linear(bias=False) -> GELU -> Linear(bias=False); Dropout = id.
    h = jnp.dot(h, w3_ref[...], preferred_element_type=jnp.float32)
    h = _gelu(h)
    h = jnp.dot(h, w4_ref[...], preferred_element_type=jnp.float32)

    o_ref[...] = h.astype(o_ref.dtype)


def _pick_row_tile(n_rows):
    # Largest multiple-of-8 tile that divides n_rows while leaving >=2 grid steps
    # (so both TensorCores / megacore halves get work); fall back to the full extent
    # (a full-extent block is always legal regardless of the (8,128) constraint).
    for tm in (512, 256, 128, 64, 32, 16, 8):
        if n_rows % tm == 0 and n_rows // tm >= 2:
            return tm
    return n_rows


def fnet_block_pallas(x, cos_mat, ln_g, ln_b, w1, w2, w3, w4):
    n_rows, c = x.shape
    assert c % 128 == 0, "n_embd must be a multiple of 128 for lane-dense blocks"
    tm = _pick_row_tile(n_rows)

    row_spec = pl.BlockSpec((tm, c), lambda i: (i, 0))
    mat_spec = pl.BlockSpec((c, c), lambda i: (0, 0))   # constant -> stays resident
    vec_spec = pl.BlockSpec((1, c), lambda i: (0, 0))

    return pl.pallas_call(
        fnet_block_kernel,
        out_shape=jax.ShapeDtypeStruct((n_rows, c), jnp.float32),
        grid_spec=pltpu.PrefetchScalarGridSpec(
            num_scalar_prefetch=0,
            grid=(n_rows // tm,),
            in_specs=[row_spec, mat_spec, vec_spec, vec_spec,
                      mat_spec, mat_spec, mat_spec, mat_spec],
            out_specs=row_spec,
        ),
        compiler_params=pltpu.CompilerParams(
            dimension_semantics=("parallel",)),
    )(x, cos_mat, ln_g, ln_b, w1, w2, w3, w4)


# ----------------------------------------------------------------------------
# Kernel 2: final LayerNorm (bias=False) + lm_head on the last token only.
# ----------------------------------------------------------------------------
def fnet_head_kernel(x_ref, gf_ref, wlm_ref, o_ref):
    y = _layernorm(x_ref[...], gf_ref[...], beta=None)       # (B, C)
    o_ref[...] = jnp.dot(y, wlm_ref[...], preferred_element_type=jnp.float32)


def fnet_head_pallas(x_last, ln_f_g, lm_head_t):
    b, c = x_last.shape
    v = lm_head_t.shape[1]
    return pl.pallas_call(
        fnet_head_kernel,
        out_shape=jax.ShapeDtypeStruct((b, v), jnp.float32),
        grid_spec=pltpu.PrefetchScalarGridSpec(
            num_scalar_prefetch=0,
            grid=(1,),
            in_specs=[pl.BlockSpec((b, c), lambda i: (0, 0)),
                      pl.BlockSpec((1, c), lambda i: (0, 0)),
                      pl.BlockSpec((c, v), lambda i: (0, 0))],
            out_specs=pl.BlockSpec((b, v), lambda i: (0, 0)),
        ),
    )(x_last, ln_f_g, lm_head_t)


# ----------------------------------------------------------------------------
# Full forward (targets=None path). Returns logits of shape (B, 1, vocab).
# ----------------------------------------------------------------------------
def fnet_forward(idx, params):
    wte = params["wte"]          # (V, C) -- tied with lm_head.weight
    wpe = params["wpe"]          # (block_size, C)
    # Embedding gathers stay in XLA (data-dependent row gather; a Pallas
    # scalar-prefetch gather is not worth it at these sizes). Dropout = identity.
    x = (wte[idx] + wpe[idx]).astype(jnp.float32)            # (B, T, C)
    b, t, c = x.shape
    x = x.reshape(b * t, c)
    for lp in params["layers"]:
        x = fnet_block_pallas(x, params["cos_mat"],
                              lp["ln_g"], lp["ln_b"],
                              lp["w_four1"], lp["w_four2"],
                              lp["w_ff1"], lp["w_ff2"])
    x_last = x.reshape(b, t, c)[:, -1, :]                     # only last token -> lm_head
    logits = fnet_head_pallas(x_last, params["ln_f_g"], params["lm_head_t"])
    return logits[:, None, :]                                 # like torch's x[:, [-1], :]


# ----------------------------------------------------------------------------
# Pure-JAX reference mirroring the PyTorch forward (uses a true FFT).
# ----------------------------------------------------------------------------
def fnet_reference(idx, params):
    x = (params["wte"][idx] + params["wpe"][idx]).astype(jnp.float32)
    for lp in params["layers"]:
        fx = jnp.real(jnp.fft.fft(x, axis=-1)).astype(jnp.float32)
        h = _layernorm(fx, lp["ln_g"], lp["ln_b"])
        h = _gelu(h @ lp["w_four1"]) @ lp["w_four2"]
        h = _layernorm(h, lp["ln_g"], lp["ln_b"])
        x = _gelu(h @ lp["w_ff1"]) @ lp["w_ff2"]
    y = _layernorm(x[:, -1, :], params["ln_f_g"], beta=None)
    return (y @ params["lm_head_t"])[:, None, :]


def init_params(key):
    keys = iter(jax.random.split(key, 4 + 6 * N_LAYER))
    # lm_head.weight (tied to wte) is re-initialized by _init_weights: N(0, 0.02).
    wte = 0.02 * jax.random.normal(next(keys), (VOCAB, N_EMBD), jnp.float32)
    # wpe is an nn.Embedding left at its default N(0, 1) init.
    wpe = jax.random.normal(next(keys), (BLOCK_SIZE, N_EMBD), jnp.float32)
    layers = []
    for _ in range(N_LAYER):
        layers.append(dict(
            ln_g=1.0 + 0.05 * jax.random.normal(next(keys), (1, N_EMBD), jnp.float32),
            ln_b=0.05 * jax.random.normal(next(keys), (1, N_EMBD), jnp.float32),
            w_four1=0.02 * jax.random.normal(next(keys), (N_EMBD, N_EMBD), jnp.float32),
            w_four2=0.02 * jax.random.normal(next(keys), (N_EMBD, N_EMBD), jnp.float32),
            w_ff1=0.02 * jax.random.normal(next(keys), (N_EMBD, N_EMBD), jnp.float32),
            w_ff2=0.02 * jax.random.normal(next(keys), (N_EMBD, N_EMBD), jnp.float32),
        ))
    ln_f_g = 1.0 + 0.05 * jax.random.normal(next(keys), (1, N_EMBD), jnp.float32)

    # Real-DFT matrix: cos_mat[n, k] = cos(2*pi*n*k/C)  =>  Re(FFT(x)) = x @ cos_mat.
    # (n*k mod C is taken in integer arithmetic before the float divide for accuracy.)
    n = np.arange(N_EMBD)
    nk = np.outer(n, n) % N_EMBD
    cos_mat = jnp.asarray(np.cos(2.0 * np.pi * nk / N_EMBD).astype(np.float32))

    return dict(wte=wte, wpe=wpe, cos_mat=cos_mat, layers=layers,
                ln_f_g=ln_f_g, lm_head_t=wte.T)


if __name__ == "__main__":
    B, T = 2, 8                       # batch=2, seq=8 (<= block_size=16)
    key = jax.random.PRNGKey(0)
    k_params, k_idx = jax.random.split(key)
    params = init_params(k_params)
    # Original code indexes wpe with the token ids, so ids must be < block_size.
    idx = jax.random.randint(k_idx, (B, T), 0, BLOCK_SIZE, dtype=jnp.int32)

    logits = jax.jit(fnet_forward)(idx, params)
    logits = jax.block_until_ready(logits)
    assert logits.shape == (B, 1, VOCAB)
    assert bool(jnp.all(jnp.isfinite(logits)))

    ref = fnet_reference(idx, params)
    np.testing.assert_allclose(np.asarray(logits), np.asarray(ref),
                               rtol=5e-2, atol=3e-2)
    print("KERNEL_OK")
</pallas_src>

<mosaic_0001>
module attributes {stable_mosaic.version = 11 : i64} {
  func.func @fnet_block_kernel(%arg0: i32, %arg1: memref<8x128xf32, #tpu.memory_space<vmem>>, %arg2: memref<128x128xf32, #tpu.memory_space<vmem>>, %arg3: memref<1x128xf32, #tpu.memory_space<vmem>>, %arg4: memref<1x128xf32, #tpu.memory_space<vmem>>, %arg5: memref<128x128xf32, #tpu.memory_space<vmem>>, %arg6: memref<128x128xf32, #tpu.memory_space<vmem>>, %arg7: memref<128x128xf32, #tpu.memory_space<vmem>>, %arg8: memref<128x128xf32, #tpu.memory_space<vmem>>, %arg9: memref<8x128xf32, #tpu.memory_space<vmem>>) attributes {dimension_semantics = [#tpu.dimension_semantics<parallel>], iteration_bounds = array<i64: 2>, scalar_prefetch = 0 : i64, scratch_operands = 0 : i64, tpu.core_type = #tpu.core_type<tc>, window_params = [{transform_indices = @transform_0, window_bounds = array<i64: 8, 128>}, {pipeline_mode = #tpu.pipeline_mode<synchronous>, transform_indices = @transform_1, window_bounds = array<i64: 128, 128>}, {pipeline_mode = #tpu.pipeline_mode<synchronous>, transform_indices = @transform_2, window_bounds = array<i64: 1, 128>}, {pipeline_mode = #tpu.pipeline_mode<synchronous>, transform_indices = @transform_3, window_bounds = array<i64: 1, 128>}, {pipeline_mode = #tpu.pipeline_mode<synchronous>, transform_indices = @transform_4, window_bounds = array<i64: 128, 128>}, {pipeline_mode = #tpu.pipeline_mode<synchronous>, transform_indices = @transform_5, window_bounds = array<i64: 128, 128>}, {pipeline_mode = #tpu.pipeline_mode<synchronous>, transform_indices = @transform_6, window_bounds = array<i64: 128, 128>}, {pipeline_mode = #tpu.pipeline_mode<synchronous>, transform_indices = @transform_7, window_bounds = array<i64: 128, 128>}, {transform_indices = @transform_8, window_bounds = array<i64: 8, 128>}]} {
    %c0 = arith.constant 0 : index
    %c0_0 = arith.constant 0 : index
    %0 = vector.load %arg1[%c0, %c0_0] : memref<8x128xf32, #tpu.memory_space<vmem>>, vector<8x128xf32>
    %c0_1 = arith.constant 0 : index
    %c0_2 = arith.constant 0 : index
    %1 = vector.load %arg3[%c0_1, %c0_2] : memref<1x128xf32, #tpu.memory_space<vmem>>, vector<1x128xf32>
    %c0_3 = arith.constant 0 : index
    %c0_4 = arith.constant 0 : index
    %2 = vector.load %arg4[%c0_3, %c0_4] : memref<1x128xf32, #tpu.memory_space<vmem>>, vector<1x128xf32>
    %c0_5 = arith.constant 0 : index
    %c0_6 = arith.constant 0 : index
    %3 = vector.load %arg2[%c0_5, %c0_6] : memref<128x128xf32, #tpu.memory_space<vmem>>, vector<128x128xf32>
    %cst = arith.constant dense<0.000000e+00> : vector<8x128xf32>
    %4 = tpu.matmul %0, %3, %cst {dimension_numbers = #tpu.dot_dimension_numbers<[1], [0], [0], [1], [0, 0, 1, 1], [], []>} : vector<8x128xf32>, vector<128x128xf32>, vector<8x128xf32> -> vector<8x128xf32>
    %cst_7 = arith.constant dense<0.000000e+00> : vector<8xf32>
    %5 = vector.multi_reduction <add>, %4, %cst_7 [1] : vector<8x128xf32> to vector<8xf32>
    %6 = vector.shape_cast %5 : vector<8xf32> to vector<8x1xf32>
    %cst_8 = arith.constant 1.280000e+02 : f32
    %7 = vector.broadcast %cst_8 : f32 to vector<8x1xf32>
    %8 = arith.divf %6, %7 : vector<8x1xf32>
    %9 = vector.broadcast %8 : vector<8x1xf32> to vector<8x128xf32>
    %10 = arith.subf %4, %9 : vector<8x128xf32>
    %11 = arith.mulf %10, %10 : vector<8x128xf32>
    %cst_9 = arith.constant dense<0.000000e+00> : vector<8xf32>
    %12 = vector.multi_reduction <add>, %11, %cst_9 [1] : vector<8x128xf32> to vector<8xf32>
    %13 = vector.shape_cast %12 : vector<8xf32> to vector<8x1xf32>
    %cst_10 = arith.constant 1.280000e+02 : f32
    %14 = vector.broadcast %cst_10 : f32 to vector<8x1xf32>
    %15 = arith.divf %13, %14 : vector<8x1xf32>
    %cst_11 = arith.constant 9.99999974E-6 : f32
    %16 = vector.broadcast %cst_11 : f32 to vector<8x1xf32>
    %17 = arith.addf %15, %16 : vector<8x1xf32>
    %18 = math.rsqrt %17 : vector<8x1xf32>
    %19 = vector.broadcast %18 : vector<8x1xf32> to vector<8x128xf32>
    %20 = arith.mulf %10, %19 : vector<8x128xf32>
    %21 = vector.broadcast %1 : vector<1x128xf32> to vector<8x128xf32>
    %22 = arith.mulf %20, %21 : vector<8x128xf32>
    %23 = vector.broadcast %2 : vector<1x128xf32> to vector<8x128xf32>
    %24 = arith.addf %22, %23 : vector<8x128xf32>
    %c0_12 = arith.constant 0 : index
    %c0_13 = arith.constant 0 : index
    %25 = vector.load %arg5[%c0_12, %c0_13] : memref<128x128xf32, #tpu.memory_space<vmem>>, vector<128x128xf32>
    %cst_14 = arith.constant dense<0.000000e+00> : vector<8x128xf32>
    %26 = tpu.matmul %24, %25, %cst_14 {dimension_numbers = #tpu.dot_dimension_numbers<[1], [0], [0], [1], [0, 0, 1, 1], [], []>} : vector<8x128xf32>, vector<128x128xf32>, vector<8x128xf32> -> vector<8x128xf32>
    %cst_15 = arith.constant 5.000000e-01 : f32
    %27 = vector.broadcast %cst_15 : f32 to vector<8x128xf32>
    %28 = arith.mulf %27, %26 : vector<8x128xf32>
    %cst_16 = arith.constant 4.471500e-02 : f32
    %29 = vector.broadcast %cst_16 : f32 to vector<8x128xf32>
    %30 = arith.mulf %29, %26 : vector<8x128xf32>
    %31 = arith.mulf %30, %26 : vector<8x128xf32>
    %32 = arith.mulf %31, %26 : vector<8x128xf32>
    %33 = arith.addf %26, %32 : vector<8x128xf32>
    %cst_17 = arith.constant 0.797884583 : f32
    %34 = vector.broadcast %cst_17 : f32 to vector<8x128xf32>
    %35 = arith.mulf %34, %33 : vector<8x128xf32>
    %36 = math.tanh %35 : vector<8x128xf32>
    %cst_18 = arith.constant 1.000000e+00 : f32
    %37 = vector.broadcast %cst_18 : f32 to vector<8x128xf32>
    %38 = arith.addf %37, %36 : vector<8x128xf32>
    %39 = arith.mulf %28, %38 : vector<8x128xf32>
    %c0_19 = arith.constant 0 : index
    %c0_20 = arith.constant 0 : index
    %40 = vector.load %arg6[%c0_19, %c0_20] : memref<128x128xf32, #tpu.memory_space<vmem>>, vector<128x128xf32>
    %cst_21 = arith.constant dense<0.000000e+00> : vector<8x128xf32>
    %41 = tpu.matmul %39, %40, %cst_21 {dimension_numbers = #tpu.dot_dimension_numbers<[1], [0], [0], [1], [0, 0, 1, 1], [], []>} : vector<8x128xf32>, vector<128x128xf32>, vector<8x128xf32> -> vector<8x128xf32>
    %cst_22 = arith.constant dense<0.000000e+00> : vector<8xf32>
    %42 = vector.multi_reduction <add>, %41, %cst_22 [1] : vector<8x128xf32> to vector<8xf32>
    %43 = vector.shape_cast %42 : vector<8xf32> to vector<8x1xf32>
    %cst_23 = arith.constant 1.280000e+02 : f32
    %44 = vector.broadcast %cst_23 : f32 to vector<8x1xf32>
    %45 = arith.divf %43, %44 : vector<8x1xf32>
    %46 = vector.broadcast %45 : vector<8x1xf32> to vector<8x128xf32>
    %47 = arith.subf %41, %46 : vector<8x128xf32>
    %48 = arith.mulf %47, %47 : vector<8x128xf32>
    %cst_24 = arith.constant dense<0.000000e+00> : vector<8xf32>
    %49 = vector.multi_reduction <add>, %48, %cst_24 [1] : vector<8x128xf32> to vector<8xf32>
    %50 = vector.shape_cast %49 : vector<8xf32> to vector<8x1xf32>
    %cst_25 = arith.constant 1.280000e+02 : f32
    %51 = vector.broadcast %cst_25 : f32 to vector<8x1xf32>
    %52 = arith.divf %50, %51 : vector<8x1xf32>
    %cst_26 = arith.constant 9.99999974E-6 : f32
    %53 = vector.broadcast %cst_26 : f32 to vector<8x1xf32>
    %54 = arith.addf %52, %53 : vector<8x1xf32>
    %55 = math.rsqrt %54 : vector<8x1xf32>
    %56 = vector.broadcast %55 : vector<8x1xf32> to vector<8x128xf32>
    %57 = arith.mulf %47, %56 : vector<8x128xf32>
    %58 = vector.broadcast %1 : vector<1x128xf32> to vector<8x128xf32>
    %59 = arith.mulf %57, %58 : vector<8x128xf32>
    %60 = vector.broadcast %2 : vector<1x128xf32> to vector<8x128xf32>
    %61 = arith.addf %59, %60 : vector<8x128xf32>
    %c0_27 = arith.constant 0 : index
    %c0_28 = arith.constant 0 : index
    %62 = vector.load %arg7[%c0_27, %c0_28] : memref<128x128xf32, #tpu.memory_space<vmem>>, vector<128x128xf32>
    %cst_29 = arith.constant dense<0.000000e+00> : vector<8x128xf32>
    %63 = tpu.matmul %61, %62, %cst_29 {dimension_numbers = #tpu.dot_dimension_numbers<[1], [0], [0], [1], [0, 0, 1, 1], [], []>} : vector<8x128xf32>, vector<128x128xf32>, vector<8x128xf32> -> vector<8x128xf32>
    %cst_30 = arith.constant 5.000000e-01 : f32
    %64 = vector.broadcast %cst_30 : f32 to vector<8x128xf32>
    %65 = arith.mulf %64, %63 : vector<8x128xf32>
    %cst_31 = arith.constant 4.471500e-02 : f32
    %66 = vector.broadcast %cst_31 : f32 to vector<8x128xf32>
    %67 = arith.mulf %66, %63 : vector<8x128xf32>
    %68 = arith.mulf %67, %63 : vector<8x128xf32>
    %69 = arith.mulf %68, %63 : vector<8x128xf32>
    %70 = arith.addf %63, %69 : vector<8x128xf32>
    %cst_32 = arith.constant 0.797884583 : f32
    %71 = vector.broadcast %cst_32 : f32 to vector<8x128xf32>
    %72 = arith.mulf %71, %70 : vector<8x128xf32>
    %73 = math.tanh %72 : vector<8x128xf32>
    %cst_33 = arith.constant 1.000000e+00 : f32
    %74 = vector.broadcast %cst_33 : f32 to vector<8x128xf32>
    %75 = arith.addf %74, %73 : vector<8x128xf32>
    %76 = arith.mulf %65, %75 : vector<8x128xf32>
    %c0_34 = arith.constant 0 : index
    %c0_35 = arith.constant 0 : index
    %77 = vector.load %arg8[%c0_34, %c0_35] : memref<128x128xf32, #tpu.memory_space<vmem>>, vector<128x128xf32>
    %cst_36 = arith.constant dense<0.000000e+00> : vector<8x128xf32>
    %78 = tpu.matmul %76, %77, %cst_36 {dimension_numbers = #tpu.dot_dimension_numbers<[1], [0], [0], [1], [0, 0, 1, 1], [], []>} : vector<8x128xf32>, vector<128x128xf32>, vector<8x128xf32> -> vector<8x128xf32>
    %c0_37 = arith.constant 0 : index
    %c0_38 = arith.constant 0 : index
    %79 = vector.load %arg9[%c0_37, %c0_38] : memref<8x128xf32, #tpu.memory_space<vmem>>, vector<8x128xf32>
    tpu.vector_store %arg9[%c0_37, %c0_38], %78 {strides = array<i32>} : memref<8x128xf32, #tpu.memory_space<vmem>>, vector<8x128xf32>,
    return
  }
  func.func @transform_0(%arg0: i32) -> (i32, i32) {
    %c0_i32 = arith.constant 0 : i32
    %c0_i32_0 = arith.constant 0 : i32
    return %arg0, %c0_i32 : i32, i32
  }
  func.func @transform_1(%arg0: i32) -> (i32, i32) {
    %c0_i32 = arith.constant 0 : i32
    %c0_i32_0 = arith.constant 0 : i32
    %c0_i32_1 = arith.constant 0 : i32
    return %c0_i32, %c0_i32_0 : i32, i32
  }
  func.func @transform_2(%arg0: i32) -> (i32, i32) {
    %c0_i32 = arith.constant 0 : i32
    %c0_i32_0 = arith.constant 0 : i32
    %c0_i32_1 = arith.constant 0 : i32
    return %c0_i32, %c0_i32_0 : i32, i32
  }
  func.func @transform_3(%arg0: i32) -> (i32, i32) {
    %c0_i32 = arith.constant 0 : i32
    %c0_i32_0 = arith.constant 0 : i32
    %c0_i32_1 = arith.constant 0 : i32
    return %c0_i32, %c0_i32_0 : i32, i32
  }
  func.func @transform_4(%arg0: i32) -> (i32, i32) {
    %c0_i32 = arith.constant 0 : i32
    %c0_i32_0 = arith.constant 0 : i32
    %c0_i32_1 = arith.constant 0 : i32
    return %c0_i32, %c0_i32_0 : i32, i32
  }
  func.func @transform_5(%arg0: i32) -> (i32, i32) {
    %c0_i32 = arith.constant 0 : i32
    %c0_i32_0 = arith.constant 0 : i32
    %c0_i32_1 = arith.constant 0 : i32
    return %c0_i32, %c0_i32_0 : i32, i32
  }
  func.func @transform_6(%arg0: i32) -> (i32, i32) {
    %c0_i32 = arith.constant 0 : i32
    %c0_i32_0 = arith.constant 0 : i32
    %c0_i32_1 = arith.constant 0 : i32
    return %c0_i32, %c0_i32_0 : i32, i32
  }
  func.func @transform_7(%arg0: i32) -> (i32, i32) {
    %c0_i32 = arith.constant 0 : i32
    %c0_i32_0 = arith.constant 0 : i32
    %c0_i32_1 = arith.constant 0 : i32
    return %c0_i32, %c0_i32_0 : i32, i32
  }
  func.func @transform_8(%arg0: i32) -> (i32, i32) {
    %c0_i32 = arith.constant 0 : i32
    %c0_i32_0 = arith.constant 0 : i32
    return %arg0, %c0_i32 : i32, i32
  }
}

module attributes {stable_mosaic.version = 11 : i64} {
  func.func @fnet_head_kernel(%arg0: i32, %arg1: memref<2x128xf32, #tpu.memory_space<vmem>>, %arg2: memref<1x128xf32, #tpu.memory_space<vmem>>, %arg3: memref<128x256xf32, #tpu.memory_space<vmem>>, %arg4: memref<2x256xf32, #tpu.memory_space<vmem>>) attributes {dimension_semantics = [#tpu.dimension_semantics<arbitrary>], iteration_bounds = array<i64: 1>, scalar_prefetch = 0 : i64, scratch_operands = 0 : i64, tpu.core_type = #tpu.core_type<tc>, window_params = [{pipeline_mode = #tpu.pipeline_mode<synchronous>, transform_indices = @transform_0, window_bounds = array<i64: 2, 128>}, {pipeline_mode = #tpu.pipeline_mode<synchronous>, transform_indices = @transform_1, window_bounds = array<i64: 1, 128>}, {pipeline_mode = #tpu.pipeline_mode<synchronous>, transform_indices = @transform_2, window_bounds = array<i64: 128, 256>}, {pipeline_mode = #tpu.pipeline_mode<synchronous>, transform_indices = @transform_3, window_bounds = array<i64: 2, 256>}]} {
    %c0 = arith.constant 0 : index
    %c0_0 = arith.constant 0 : index
    %0 = vector.load %arg1[%c0, %c0_0] : memref<2x128xf32, #tpu.memory_space<vmem>>, vector<2x128xf32>
    %c0_1 = arith.constant 0 : index
    %c0_2 = arith.constant 0 : index
    %1 = vector.load %arg2[%c0_1, %c0_2] : memref<1x128xf32, #tpu.memory_space<vmem>>, vector<1x128xf32>
    %cst = arith.constant dense<0.000000e+00> : vector<2xf32>
    %2 = vector.multi_reduction <add>, %0, %cst [1] : vector<2x128xf32> to vector<2xf32>
    %3 = vector.shape_cast %2 : vector<2xf32> to vector<2x1xf32>
    %cst_3 = arith.constant 1.280000e+02 : f32
    %4 = vector.broadcast %cst_3 : f32 to vector<2x1xf32>
    %5 = arith.divf %3, %4 : vector<2x1xf32>
    %6 = vector.broadcast %5 : vector<2x1xf32> to vector<2x128xf32>
    %7 = arith.subf %0, %6 : vector<2x128xf32>
    %8 = arith.mulf %7, %7 : vector<2x128xf32>
    %cst_4 = arith.constant dense<0.000000e+00> : vector<2xf32>
    %9 = vector.multi_reduction <add>, %8, %cst_4 [1] : vector<2x128xf32> to vector<2xf32>
    %10 = vector.shape_cast %9 : vector<2xf32> to vector<2x1xf32>
    %cst_5 = arith.constant 1.280000e+02 : f32
    %11 = vector.broadcast %cst_5 : f32 to vector<2x1xf32>
    %12 = arith.divf %10, %11 : vector<2x1xf32>
    %cst_6 = arith.constant 9.99999974E-6 : f32
    %13 = vector.broadcast %cst_6 : f32 to vector<2x1xf32>
    %14 = arith.addf %12, %13 : vector<2x1xf32>
    %15 = math.rsqrt %14 : vector<2x1xf32>
    %16 = vector.broadcast %15 : vector<2x1xf32> to vector<2x128xf32>
    %17 = arith.mulf %7, %16 : vector<2x128xf32>
    %18 = vector.broadcast %1 : vector<1x128xf32> to vector<2x128xf32>
    %19 = arith.mulf %17, %18 : vector<2x128xf32>
    %c0_7 = arith.constant 0 : index
    %c0_8 = arith.constant 0 : index
    %20 = vector.load %arg3[%c0_7, %c0_8] : memref<128x256xf32, #tpu.memory_space<vmem>>, vector<128x256xf32>
    %cst_9 = arith.constant dense<0.000000e+00> : vector<2x256xf32>
    %21 = tpu.matmul %19, %20, %cst_9 {dimension_numbers = #tpu.dot_dimension_numbers<[1], [0], [0], [1], [0, 0, 1, 1], [], []>} : vector<2x128xf32>, vector<128x256xf32>, vector<2x256xf32> -> vector<2x256xf32>
    %c0_10 = arith.constant 0 : index
    %c0_11 = arith.constant 0 : index
    %22 = vector.load %arg4[%c0_10, %c0_11] : memref<2x256xf32, #tpu.memory_space<vmem>>, vector<2x256xf32>
    tpu.vector_store %arg4[%c0_10, %c0_11], %21 {strides = array<i32>} : memref<2x256xf32, #tpu.memory_space<vmem>>, vector<2x256xf32>,
    return
  }
  func.func @transform_0(%arg0: i32) -> (i32, i32) {
    %c0_i32 = arith.constant 0 : i32
    %c0_i32_0 = arith.constant 0 : i32
    %c0_i32_1 = arith.constant 0 : i32
    return %c0_i32, %c0_i32_0 : i32, i32
  }
  func.func @transform_1(%arg0: i32) -> (i32, i32) {
    %c0_i32 = arith.constant 0 : i32
    %c0_i32_0 = arith.constant 0 : i32
    %c0_i32_1 = arith.constant 0 : i32
    return %c0_i32, %c0_i32_0 : i32, i32
  }
  func.func @transform_2(%arg0: i32) -> (i32, i32) {
    %c0_i32 = arith.constant 0 : i32
    %c0_i32_0 = arith.constant 0 : i32
    %c0_i32_1 = arith.constant 0 : i32
    return %c0_i32, %c0_i32_0 : i32, i32
  }
  func.func @transform_3(%arg0: i32) -> (i32, i32) {
    %c0_i32 = arith.constant 0 : i32
    %c0_i32_0 = arith.constant 0 : i32
    %c0_i32_1 = arith.constant 0 : i32
    return %c0_i32, %c0_i32_0 : i32, i32
  }
}

module attributes {stable_mosaic.version = 11 : i64} {
  func.func @fnet_block_kernel(%arg0: i32, %arg1: memref<8x128xf32, #tpu.memory_space<vmem>>, %arg2: memref<128x128xf32, #tpu.memory_space<vmem>>, %arg3: memref<1x128xf32, #tpu.memory_space<vmem>>, %arg4: memref<1x128xf32, #tpu.memory_space<vmem>>, %arg5: memref<128x128xf32, #tpu.memory_space<vmem>>, %arg6: memref<128x128xf32, #tpu.memory_space<vmem>>, %arg7: memref<128x128xf32, #tpu.memory_space<vmem>>, %arg8: memref<128x128xf32, #tpu.memory_space<vmem>>, %arg9: memref<8x128xf32, #tpu.memory_space<vmem>>) attributes {dimension_semantics = [#tpu.dimension_semantics<parallel>], iteration_bounds = array<i64: 2>, scalar_prefetch = 0 : i64, scratch_operands = 0 : i64, tpu.core_type = #tpu.core_type<tc>, window_params = [{transform_indices = @transform_0, window_bounds = array<i64: 8, 128>}, {pipeline_mode = #tpu.pipeline_mode<synchronous>, transform_indices = @transform_1, window_bounds = array<i64: 128, 128>}, {pipeline_mode = #tpu.pipeline_mode<synchronous>, transform_indices = @transform_2, window_bounds = array<i64: 1, 128>}, {pipeline_mode = #tpu.pipeline_mode<synchronous>, transform_indices = @transform_3, window_bounds = array<i64: 1, 128>}, {pipeline_mode = #tpu.pipeline_mode<synchronous>, transform_indices = @transform_4, window_bounds = array<i64: 128, 128>}, {pipeline_mode = #tpu.pipeline_mode<synchronous>, transform_indices = @transform_5, window_bounds = array<i64: 128, 128>}, {pipeline_mode = #tpu.pipeline_mode<synchronous>, transform_indices = @transform_6, window_bounds = array<i64: 128, 128>}, {pipeline_mode = #tpu.pipeline_mode<synchronous>, transform_indices = @transform_7, window_bounds = array<i64: 128, 128>}, {transform_indices = @transform_8, window_bounds = array<i64: 8, 128>}]} {
    %c0 = arith.constant 0 : index
    %c0_0 = arith.constant 0 : index
    %0 = vector.load %arg1[%c0, %c0_0] : memref<8x128xf32, #tpu.memory_space<vmem>>, vector<8x128xf32>
    %c0_1 = arith.constant 0 : index
    %c0_2 = arith.constant 0 : index
    %1 = vector.load %arg3[%c0_1, %c0_2] : memref<1x128xf32, #tpu.memory_space<vmem>>, vector<1x128xf32>
    %c0_3 = arith.constant 0 : index
    %c0_4 = arith.constant 0 : index
    %2 = vector.load %arg4[%c0_3, %c0_4] : memref<1x128xf32, #tpu.memory_space<vmem>>, vector<1x128xf32>
    %c0_5 = arith.constant 0 : index
    %c0_6 = arith.constant 0 : index
    %3 = vector.load %arg2[%c0_5, %c0_6] : memref<128x128xf32, #tpu.memory_space<vmem>>, vector<128x128xf32>
    %cst = arith.constant dense<0.000000e+00> : vector<8x128xf32>
    %4 = tpu.matmul %0, %3, %cst {dimension_numbers = #tpu.dot_dimension_numbers<[1], [0], [0], [1], [0, 0, 1, 1], [], []>} : vector<8x128xf32>, vector<128x128xf32>, vector<8x128xf32> -> vector<8x128xf32>
    %cst_7 = arith.constant dense<0.000000e+00> : vector<8xf32>
    %5 = vector.multi_reduction <add>, %4, %cst_7 [1] : vector<8x128xf32> to vector<8xf32>
    %6 = vector.shape_cast %5 : vector<8xf32> to vector<8x1xf32>
    %cst_8 = arith.constant 1.280000e+02 : f32
    %7 = vector.broadcast %cst_8 : f32 to vector<8x1xf32>
    %8 = arith.divf %6, %7 : vector<8x1xf32>
    %9 = vector.broadcast %8 : vector<8x1xf32> to vector<8x128xf32>
    %10 = arith.subf %4, %9 : vector<8x128xf32>
    %11 = arith.mulf %10, %10 : vector<8x128xf32>
    %cst_9 = arith.constant dense<0.000000e+00> : vector<8xf32>
    %12 = vector.multi_reduction <add>, %11, %cst_9 [1] : vector<8x128xf32> to vector<8xf32>
    %13 = vector.shape_cast %12 : vector<8xf32> to vector<8x1xf32>
    %cst_10 = arith.constant 1.280000e+02 : f32
    %14 = vector.broadcast %cst_10 : f32 to vector<8x1xf32>
    %15 = arith.divf %13, %14 : vector<8x1xf32>
    %cst_11 = arith.constant 9.99999974E-6 : f32
    %16 = vector.broadcast %cst_11 : f32 to vector<8x1xf32>
    %17 = arith.addf %15, %16 : vector<8x1xf32>
    %18 = math.rsqrt %17 : vector<8x1xf32>
    %19 = vector.broadcast %18 : vector<8x1xf32> to vector<8x128xf32>
    %20 = arith.mulf %10, %19 : vector<8x128xf32>
    %21 = vector.broadcast %1 : vector<1x128xf32> to vector<8x128xf32>
    %22 = arith.mulf %20, %21 : vector<8x128xf32>
    %23 = vector.broadcast %2 : vector<1x128xf32> to vector<8x128xf32>
    %24 = arith.addf %22, %23 : vector<8x128xf32>
    %c0_12 = arith.constant 0 : index
    %c0_13 = arith.constant 0 : index
    %25 = vector.load %arg5[%c0_12, %c0_13] : memref<128x128xf32, #tpu.memory_space<vmem>>, vector<128x128xf32>
    %cst_14 = arith.constant dense<0.000000e+00> : vector<8x128xf32>
    %26 = tpu.matmul %24, %25, %cst_14 {dimension_numbers = #tpu.dot_dimension_numbers<[1], [0], [0], [1], [0, 0, 1, 1], [], []>} : vector<8x128xf32>, vector<128x128xf32>, vector<8x128xf32> -> vector<8x128xf32>
    %cst_15 = arith.constant 5.000000e-01 : f32
    %27 = vector.broadcast %cst_15 : f32 to vector<8x128xf32>
    %28 = arith.mulf %27, %26 : vector<8x128xf32>
    %cst_16 = arith.constant 4.471500e-02 : f32
    %29 = vector.broadcast %cst_16 : f32 to vector<8x128xf32>
    %30 = arith.mulf %29, %26 : vector<8x128xf32>
    %31 = arith.mulf %30, %26 : vector<8x128xf32>
    %32 = arith.mulf %31, %26 : vector<8x128xf32>
    %33 = arith.addf %26, %32 : vector<8x128xf32>
    %cst_17 = arith.constant 0.797884583 : f32
    %34 = vector.broadcast %cst_17 : f32 to vector<8x128xf32>
    %35 = arith.mulf %34, %33 : vector<8x128xf32>
    %36 = math.tanh %35 : vector<8x128xf32>
    %cst_18 = arith.constant 1.000000e+00 : f32
    %37 = vector.broadcast %cst_18 : f32 to vector<8x128xf32>
    %38 = arith.addf %37, %36 : vector<8x128xf32>
    %39 = arith.mulf %28, %38 : vector<8x128xf32>
    %c0_19 = arith.constant 0 : index
    %c0_20 = arith.constant 0 : index
    %40 = vector.load %arg6[%c0_19, %c0_20] : memref<128x128xf32, #tpu.memory_space<vmem>>, vector<128x128xf32>
    %cst_21 = arith.constant dense<0.000000e+00> : vector<8x128xf32>
    %41 = tpu.matmul %39, %40, %cst_21 {dimension_numbers = #tpu.dot_dimension_numbers<[1], [0], [0], [1], [0, 0, 1, 1], [], []>} : vector<8x128xf32>, vector<128x128xf32>, vector<8x128xf32> -> vector<8x128xf32>
    %cst_22 = arith.constant dense<0.000000e+00> : vector<8xf32>
    %42 = vector.multi_reduction <add>, %41, %cst_22 [1] : vector<8x128xf32> to vector<8xf32>
    %43 = vector.shape_cast %42 : vector<8xf32> to vector<8x1xf32>
    %cst_23 = arith.constant 1.280000e+02 : f32
    %44 = vector.broadcast %cst_23 : f32 to vector<8x1xf32>
    %45 = arith.divf %43, %44 : vector<8x1xf32>
    %46 = vector.broadcast %45 : vector<8x1xf32> to vector<8x128xf32>
    %47 = arith.subf %41, %46 : vector<8x128xf32>
    %48 = arith.mulf %47, %47 : vector<8x128xf32>
    %cst_24 = arith.constant dense<0.000000e+00> : vector<8xf32>
    %49 = vector.multi_reduction <add>, %48, %cst_24 [1] : vector<8x128xf32> to vector<8xf32>
    %50 = vector.shape_cast %49 : vector<8xf32> to vector<8x1xf32>
    %cst_25 = arith.constant 1.280000e+02 : f32
    %51 = vector.broadcast %cst_25 : f32 to vector<8x1xf32>
    %52 = arith.divf %50, %51 : vector<8x1xf32>
    %cst_26 = arith.constant 9.99999974E-6 : f32
    %53 = vector.broadcast %cst_26 : f32 to vector<8x1xf32>
    %54 = arith.addf %52, %53 : vector<8x1xf32>
    %55 = math.rsqrt %54 : vector<8x1xf32>
    %56 = vector.broadcast %55 : vector<8x1xf32> to vector<8x128xf32>
    %57 = arith.mulf %47, %56 : vector<8x128xf32>
    %58 = vector.broadcast %1 : vector<1x128xf32> to vector<8x128xf32>
    %59 = arith.mulf %57, %58 : vector<8x128xf32>
    %60 = vector.broadcast %2 : vector<1x128xf32> to vector<8x128xf32>
    %61 = arith.addf %59, %60 : vector<8x128xf32>
    %c0_27 = arith.constant 0 : index
    %c0_28 = arith.constant 0 : index
    %62 = vector.load %arg7[%c0_27, %c0_28] : memref<128x128xf32, #tpu.memory_space<vmem>>, vector<128x128xf32>
    %cst_29 = arith.constant dense<0.000000e+00> : vector<8x128xf32>
    %63 = tpu.matmul %61, %62, %cst_29 {dimension_numbers = #tpu.dot_dimension_numbers<[1], [0], [0], [1], [0, 0, 1, 1], [], []>} : vector<8x128xf32>, vector<128x128xf32>, vector<8x128xf32> -> vector<8x128xf32>
    %cst_30 = arith.constant 5.000000e-01 : f32
    %64 = vector.broadcast %cst_30 : f32 to vector<8x128xf32>
    %65 = arith.mulf %64, %63 : vector<8x128xf32>
    %cst_31 = arith.constant 4.471500e-02 : f32
    %66 = vector.broadcast %cst_31 : f32 to vector<8x128xf32>
    %67 = arith.mulf %66, %63 : vector<8x128xf32>
    %68 = arith.mulf %67, %63 : vector<8x128xf32>
    %69 = arith.mulf %68, %63 : vector<8x128xf32>
    %70 = arith.addf %63, %69 : vector<8x128xf32>
    %cst_32 = arith.constant 0.797884583 : f32
    %71 = vector.broadcast %cst_32 : f32 to vector<8x128xf32>
    %72 = arith.mulf %71, %70 : vector<8x128xf32>
    %73 = math.tanh %72 : vector<8x128xf32>
    %cst_33 = arith.constant 1.000000e+00 : f32
    %74 = vector.broadcast %cst_33 : f32 to vector<8x128xf32>
    %75 = arith.addf %74, %73 : vector<8x128xf32>
    %76 = arith.mulf %65, %75 : vector<8x128xf32>
    %c0_34 = arith.constant 0 : index
    %c0_35 = arith.constant 0 : index
    %77 = vector.load %arg8[%c0_34, %c0_35] : memref<128x128xf32, #tpu.memory_space<vmem>>, vector<128x128xf32>
    %cst_36 = arith.constant dense<0.000000e+00> : vector<8x128xf32>
    %78 = tpu.matmul %76, %77, %cst_36 {dimension_numbers = #tpu.dot_dimension_numbers<[1], [0], [0], [1], [0, 0, 1, 1], [], []>} : vector<8x128xf32>, vector<128x128xf32>, vector<8x128xf32> -> vector<8x128xf32>
    %c0_37 = arith.constant 0 : index
    %c0_38 = arith.constant 0 : index
    %79 = vector.load %arg9[%c0_37, %c0_38] : memref<8x128xf32, #tpu.memory_space<vmem>>, vector<8x128xf32>
    tpu.vector_store %arg9[%c0_37, %c0_38], %78 {strides = array<i32>} : memref<8x128xf32, #tpu.memory_space<vmem>>, vector<8x128xf32>,
    return
  }
  func.func @transform_0(%arg0: i32) -> (i32, i32) {
    %c0_i32 = arith.constant 0 : i32
    %c0_i32_0 = arith.constant 0 : i32
    return %arg0, %c0_i32 : i32, i32
  }
  func.func @transform_1(%arg0: i32) -> (i32, i32) {
    %c0_i32 = arith.constant 0 : i32
    %c0_i32_0 = arith.constant 0 : i32
    %c0_i32_1 = arith.constant 0 : i32
    return %c0_i32, %c0_i32_0 : i32, i32
  }
  func.func @transform_2(%arg0: i32) -> (i32, i32) {
    %c0_i32 = arith.constant 0 : i32
    %c0_i32_0 = arith.constant 0 : i32
    %c0_i32_1 = arith.constant 0 : i32
    return %c0_i32, %c0_i32_0 : i32, i32
  }
  func.func @transform_3(%arg0: i32) -> (i32, i32) {
    %c0_i32 = arith.constant 0 : i32
    %c0_i32_0 = arith.constant 0 : i32
    %c0_i32_1 = arith.constant 0 : i32
    return %c0_i32, %c0_i32_0 : i32, i32
  }
  func.func @transform_4(%arg0: i32) -> (i32, i32) {
    %c0_i32 = arith.constant 0 : i32
    %c0_i32_0 = arith.constant 0 : i32
    %c0_i32_1 = arith.constant 0 : i32
    return %c0_i32, %c0_i32_0 : i32, i32
  }
  func.func @transform_5(%arg0: i32) -> (i32, i32) {
    %c0_i32 = arith.constant 0 : i32
    %c0_i32_0 = arith.constant 0 : i32
    %c0_i32_1 = arith.constant 0 : i32
    return %c0_i32, %c0_i32_0 : i32, i32
  }
  func.func @transform_6(%arg0: i32) -> (i32, i32) {
    %c0_i32 = arith.constant 0 : i32
    %c0_i32_0 = arith.constant 0 : i32
    %c0_i32_1 = arith.constant 0 : i32
    return %c0_i32, %c0_i32_0 : i32, i32
  }
  func.func @transform_7(%arg0: i32) -> (i32, i32) {
    %c0_i32 = arith.constant 0 : i32
    %c0_i32_0 = arith.constant 0 : i32
    %c0_i32_1 = arith.constant 0 : i32
    return %c0_i32, %c0_i32_0 : i32, i32
  }
  func.func @transform_8(%arg0: i32) -> (i32, i32) {
    %c0_i32 = arith.constant 0 : i32
    %c0_i32_0 = arith.constant 0 : i32
    return %arg0, %c0_i32 : i32, i32
  }
}

</mosaic_0001>

<llo_original>
// kernel: fnet_forward.5
$region0: #{fnet_forward.5}
  #allocation0 [shape = 'u32[]', space=smem, size = 0x4, offset = 0x4, fixed_abs, tag = 'smem constant byte address 0x4 - core index']
  #allocation1 [shape = 'u32[144,128]{1,0:T(1,128)}', space=vmem, size = 0x12000, scoped, tag = 'internal scratch']
  %s0 = inlined_call_operand.vmem [shape: f32[2,128], index: 0, kind: input, shape index: {}]
  %s1 = inlined_call_operand.vmem [shape: f32[1,128], index: 1, kind: input, shape index: {}]
  %s2 = inlined_call_operand.vmem [shape: f32[128,256], index: 2, kind: input, shape index: {}]
  %s3 = inlined_call_operand.vmem [shape: f32[2,256], index: 3, kind: output, shape index: {}]
  %s4 = sld [smem:[#allocation0]]
  $region22: #{fnet_forward.5} parent=0
    _
  %s6 = ssub.s32 1, %s4
  %s7 = scalar_select 0, %s6, %s4
  // Predicated region
  $region2: #{fnet_forward.5} parent=0 // pred_check
    _
  $region3: #{fnet_forward.5} parent=0 // pred_check_branch
    %9 = sbr.rel (0) target = $region5
  $region4: #{fnet_forward.5} parent=0 // pred_region
    _
  $region5: #{fnet_forward.5} parent=0 // pred_fallthru
    _
  // Predicated region
  $region6: #{fnet_forward.5} parent=0 // pred_check
    _
  $region7: #{fnet_forward.5} parent=0 // pred_check_branch
    %11 = sbr.rel (0) target = $region9
  $region8: #{fnet_forward.5} parent=0 // pred_region
    _
  $region9: #{fnet_forward.5} parent=0 // pred_fallthru
    _
  // Predicated region
  $region10: #{fnet_forward.5} parent=0 // pred_check
    _
  $region11: #{fnet_forward.5} parent=0 // pred_check_branch
    %13 = sbr.rel (0) target = $region13
  $region12: #{fnet_forward.5} parent=0 // pred_region
    _
  $region13: #{fnet_forward.5} parent=0 // pred_fallthru
    _
  %v14 = vld [vmem:[%s0] sm:$0x3]
  %v15 = vld [vmem:[%s1] sm:$0x1]
  %vm16 = vcmask 1041408
  %v17 = vsel %vm16, %v14, 0.0
  %18 = vadd.xlane.f32.xlu0 %v17
  %v19 = vpop.xlane.xlu0 %18
  %v20 = vrcp.pop 128.0
  %v21 = vmul.f32 %v19, %v20
  %v22 = vsub.f32 %v14, %v21
  %v23 = vmul.f32 %v22, %v22
  %v24 = vsel %vm16, %v23, 0.0
  %25 = vadd.xlane.f32.xlu0 %v24
  %v26 = vpop.xlane.xlu0 %25
  %v27 = vmul.f32 %v26, %v20
  %v28 = vadd.f32 %v27, 1e-05
  %v29 = vrsqrt.pop %v28
  %v30 = vmul.f32 %v22, %v29
  %v32 = vlaneseq
  %v33 = vshrl.u32 %v32, 7
  %v34 = vsub.s32 0, %v33
  %v35 = vrot.slane %v15, %v34
  %v37 = vmul.f32 %v30, %v35
  %v38 = vld [vmem:[%s2] sm:$0xff]
  %v39 = vld [vmem:[%s2 + $0x8] sm:$0xff]
  %v40 = vld [vmem:[%s2 + $0x10] sm:$0xff]
  %v41 = vld [vmem:[%s2 + $0x18] sm:$0xff]
  %v42 = vld [vmem:[%s2 + $0x20] sm:$0xff]
  %v43 = vld [vmem:[%s2 + $0x28] sm:$0xff]
  %v44 = vld [vmem:[%s2 + $0x30] sm:$0xff]
  %v45 = vld [vmem:[%s2 + $0x38] sm:$0xff]
  %v46 = vld [vmem:[%s2 + $0x40] sm:$0xff]
  %v47 = vld [vmem:[%s2 + $0x48] sm:$0xff]
  %v48 = vld [vmem:[%s2 + $0x50] sm:$0xff]
  %v49 = vld [vmem:[%s2 + $0x58] sm:$0xff]
  %v50 = vld [vmem:[%s2 + $0x60] sm:$0xff]
  %v51 = vld [vmem:[%s2 + $0x68] sm:$0xff]
  %v52 = vld [vmem:[%s2 + $0x70] sm:$0xff]
  %v53 = vld [vmem:[%s2 + $0x78] sm:$0xff]
  %v54 = vld [vmem:[%s2 + $0x80] sm:$0xff]
  %v55 = vld [vmem:[%s2 + $0x88] sm:$0xff]
  %v56 = vld [vmem:[%s2 + $0x90] sm:$0xff]
  %v57 = vld [vmem:[%s2 + $0x98] sm:$0xff]
  %v58 = vld [vmem:[%s2 + $0xa0] sm:$0xff]
  %v59 = vld [vmem:[%s2 + $0xa8] sm:$0xff]
  %v60 = vld [vmem:[%s2 + $0xb0] sm:$0xff]
  %v61 = vld [vmem:[%s2 + $0xb8] sm:$0xff]
  %v62 = vld [vmem:[%s2 + $0xc0] sm:$0xff]
  %v63 = vld [vmem:[%s2 + $0xc8] sm:$0xff]
  %v64 = vld [vmem:[%s2 + $0xd0] sm:$0xff]
  %v65 = vld [vmem:[%s2 + $0xd8] sm:$0xff]
  %v66 = vld [vmem:[%s2 + $0xe0] sm:$0xff]
  %v67 = vld [vmem:[%s2 + $0xe8] sm:$0xff]
  %v68 = vld [vmem:[%s2 + $0xf0] sm:$0xff]
  %v69 = vld [vmem:[%s2 + $0xf8] sm:$0xff]
  %70 = vmatprep.subr.mxu0 %v39
  %71 = vmatpush1.msra.mxu0 %v38
  %72 = vmatprep.subr.mxu0 %v41
  %73 = vmatpush1.msra.mxu0 %v40
  %74 = vmatprep.subr.mxu0 %v43
  %75 = vmatpush1.msra.mxu0 %v42
  %76 = vmatprep.subr.mxu0 %v45
  %77 = vmatpush1.msra.mxu0 %v44
  %78 = vmatprep.subr.mxu0 %v47
  %79 = vmatpush1.msra.mxu0 %v46
  %80 = vmatprep.subr.mxu0 %v49
  %81 = vmatpush1.msra.mxu0 %v48
  %82 = vmatprep.subr.mxu0 %v51
  %83 = vmatpush1.msra.mxu0 %v50
  %84 = vmatprep.subr.mxu0 %v53
  %85 = vmatpush1.msra.mxu0 %v52
  %86 = vmatprep.subr.mxu0 %v55
  %87 = vmatpush1.msra.mxu0 %v54
  %88 = vmatprep.subr.mxu0 %v57
  %89 = vmatpush1.msra.mxu0 %v56
  %90 = vmatprep.subr.mxu0 %v59
  %91 = vmatpush1.msra.mxu0 %v58
  %92 = vmatprep.subr.mxu0 %v61
  %93 = vmatpush1.msra.mxu0 %v60
  %94 = vmatprep.subr.mxu0 %v63
  %95 = vmatpush1.msra.mxu0 %v62
  %96 = vmatprep.subr.mxu0 %v65
  %97 = vmatpush1.msra.mxu0 %v64
  %98 = vmatprep.subr.mxu0 %v67
  %99 = vmatpush1.msra.mxu0 %v66
  %100 = vmatprep.subr.mxu0 %v69
  %101 = vmatpush1.msra.mxu0 %v68
  %102 = vmatprep.subr.mxu0 0.0
  %103 = vmatpush1.msra.mxu0 0.0
  %104 = vmatprep.subr.mxu0 0.0
  %105 = vmatpush1.msra.mxu0 0.0
  %106 = vmatprep.subr.mxu0 0.0
  %107 = vmatpush1.msra.mxu0 0.0
  %108 = vmatprep.subr.mxu0 0.0
  %109 = vmatpush1.msra.mxu0 0.0
  %110 = vmatprep.subr.mxu0 0.0
  %111 = vmatpush1.msra.mxu0 0.0
  %112 = vmatprep.subr.mxu0 0.0
  %113 = vmatpush1.msra.mxu0 0.0
  %114 = vmatprep.subr.mxu0 0.0
  %115 = vmatpush1.msra.mxu0 0.0
  %116 = vmatprep.subr.mxu0 0.0
  %117 = vmatpush1.msra.mxu0 0.0
  %118 = vmatprep.subr.mxu0 0.0
  %119 = vmatpush1.msra.mxu0 0.0
  %120 = vmatprep.subr.mxu0 0.0
  %121 = vmatpush1.msra.mxu0 0.0
  %122 = vmatprep.subr.mxu0 0.0
  %123 = vmatpush1.msra.mxu0 0.0
  %124 = vmatprep.subr.mxu0 0.0
  %125 = vmatpush1.msra.mxu0 0.0
  %126 = vmatprep.subr.mxu0 0.0
  %127 = vmatpush1.msra.mxu0 0.0
  %128 = vmatprep.subr.mxu0 0.0
  %129 = vmatpush1.msra.mxu0 0.0
  %130 = vmatprep.subr.mxu0 0.0
  %131 = vmatpush1.msra.mxu0 0.0
  %132 = vmatprep.subr.mxu0 0.0
  %133 = vmatpush1.msra.mxu0 0.0
  %134 = vmatprep.mubr.f32.mxu0 0.0
  %135 = vmatmul.mubr.f32.gmra.mrb[0].mxu0 %v37
  %v136 = vpop.f32.mrb[0].mxu0
  %v137 = vadd.f32 0.0, %v136
  %v138 = vpop.f32.mrb[0].mxu0
  %v139 = vadd.f32 0.0, %v138
  %140 = vdwg.mxu0
  %v143 = vcombine.low %v137, %v139
  %v145 = vunpack.c.l.s4 1983009808
  %v146 = vunpack.c.0.s8 %v145
  %v147 = vlaneseq
  %v148 = vshrl.u32 %v147, 7
  %v149 = vsub.s32 %v146, %v148
  %v150 = vrot.slane %v143, %v149
  %152 = vst [vmem:[%s3] sm:$0xf] %v150
  // Predicated region
  $region14: #{fnet_forward.5} parent=0 // pred_check
    _
  $region15: #{fnet_forward.5} parent=0 // pred_check_branch
    %154 = sbr.rel (0) target = $region17
  $region16: #{fnet_forward.5} parent=0 // pred_region
    _
  $region17: #{fnet_forward.5} parent=0 // pred_fallthru
    _
  // Predicated region
  $region18: #{fnet_forward.5} parent=0 // pred_check
    _
  $region19: #{fnet_forward.5} parent=0 // pred_check_branch
    %156 = sbr.rel (0) target = $region21
  $region20: #{fnet_forward.5} parent=0 // pred_region
    _
  $region21: #{fnet_forward.5} parent=0 // pred_fallthru
    _

// kernel: fnet_forward.4
$region0: #{fnet_forward.4}
  #allocation0 [shape = 'u32[]', space=smem, size = 0x4, offset = 0x4, fixed_abs, tag = 'smem constant byte address 0x4 - core index']
  #allocation1 [shape = 'u32[144,128]{1,0:T(1,128)}', space=vmem, size = 0x12000, scoped, tag = 'internal scratch']
  %s0 = inlined_call_operand.vmem [shape: f32[16,128], index: 0, kind: input, shape index: {}]
  %s1 = inlined_call_operand.vmem [shape: f32[128,128], index: 1, kind: input, shape index: {}]
  %s2 = inlined_call_operand.vmem [shape: f32[1,128], index: 2, kind: input, shape index: {}]
  %s3 = inlined_call_operand.vmem [shape: f32[1,128], index: 3, kind: input, shape index: {}]
  %s4 = inlined_call_operand.vmem [shape: f32[128,128], index: 4, kind: input, shape index: {}]
  %s5 = inlined_call_operand.vmem [shape: f32[128,128], index: 5, kind: input, shape index: {}]
  %s6 = inlined_call_operand.vmem [shape: f32[128,128], index: 6, kind: input, shape index: {}]
  %s7 = inlined_call_operand.vmem [shape: f32[128,128], index: 7, kind: input, shape index: {}]
  %s8 = inlined_call_operand.vmem [shape: f32[16,128], index: 8, kind: output, shape index: {}]
  %s9 = sld [smem:[#allocation0]]
  $region65: #{fnet_forward.4} parent=0
    _
  %s11 = ssub.s32 1, %s9
  %s12 = scalar_select 0, %s11, %s9
  loop: start=0, step=1, limit=4
  $region2: #{fnet_forward.4} parent=0 // loop_pre_header
    _
  $region3: #{fnet_forward.4} parent=0 // loop_header
    %s14 = sphi 0, %s18
    %p15 = scmp.ge.s32.totalorder %s14, 4
    %s24 = sphi 0, %s26
    %s27 = sphi 0, %s24
    %s28 = sphi 0, %s27
    %s44 = sphi 0, %s28
    %s48 = sphi 0, %s48
    %s50 = sphi 0, %s48
    %s51 = sphi 0, %s50
    %s65 = sphi 0, %s51
    %s69 = sphi 0, %s69
    %s71 = sphi 0, %s69
    %s72 = sphi 0, %s71
    %s86 = sphi 0, %s72
    %s90 = sphi 0, %s90
    %s92 = sphi 0, %s90
    %s93 = sphi 0, %s92
    %s107 = sphi 0, %s93
    %s111 = sphi 0, %s111
    %s113 = sphi 0, %s111
    %s114 = sphi 0, %s113
    %s128 = sphi 0, %s114
    %s132 = sphi 0, %s132
    %s134 = sphi 0, %s132
    %s135 = sphi 0, %s134
    %s149 = sphi 0, %s135
    %s153 = sphi 0, %s153
    %s155 = sphi 0, %s153
    %s156 = sphi 0, %s155
    %s170 = sphi 0, %s156
    %s174 = sphi 0, %s174
    %s176 = sphi 0, %s174
    %s177 = sphi 0, %s176
    %s191 = sphi 0, %s177
    %s197 = sphi 0, %s199
    %s200 = sphi 0, %s197
    %s201 = sphi 0, %s200
    %s217 = sphi 0, %s201
  $region4: #{fnet_forward.4} parent=0 // loop_header_branch
    %17 = sbr.rel (%p15) target = $region8
  $region5: #{fnet_forward.4} parent=0 // loop_body
    %s19 = ssub.s32 %s14, 1
    %s20 = ssub.s32 %s14, 2
    %s21 = sadd.s32 %s14, 1
    %s22 = ssub.s32 %s14, %s21
    %p23 = scmp.eq.s32.totalorder %s22, 0
    %s25 = sadd.s32 %s24, 1
    %s26 = scalar_select %p23, %s24, %s25
    %p29 = pneg %p23
    %p30 = scmp.eq.s32.totalorder %s14, 1
    %p31 = por %p29, %p30
    %p32 = scmp.ne.s32.totalorder %s24, %s27
    %p33 = scmp.eq.s32.totalorder %s14, 0
    %p34 = por %p32, %p33
    %p35 = scmp.ne.s32.totalorder %s24, %s27
    %p36 = scmp.eq.s32.totalorder %s19, 1
    %p37 = por %p35, %p36
    %p38 = scmp.ne.s32.totalorder %s27, %s28
    %p39 = scmp.eq.s32.totalorder %s19, 0
    %p40 = por %p38, %p39
    %p41 = scmp.ne.s32.totalorder %s27, %s28
    %p42 = scmp.eq.s32.totalorder %s20, 1
    %p43 = por %p41, %p42
    %p45 = scmp.ne.s32.totalorder %s28, %s44
    %p46 = scmp.eq.s32.totalorder %s20, 0
    %p47 = por %p45, %p46
    %s49 = sadd.s32 %s48, 1
    %p52 = scmp.eq.s32.totalorder %s14, 1
    %p53 = scmp.ne.s32.totalorder %s48, %s50
    %p54 = scmp.eq.s32.totalorder %s14, 0
    %p55 = por %p53, %p54
    %p56 = scmp.ne.s32.totalorder %s48, %s50
    %p57 = scmp.eq.s32.totalorder %s19, 1
    %p58 = por %p56, %p57
    %p59 = scmp.ne.s32.totalorder %s50, %s51
    %p60 = scmp.eq.s32.totalorder %s19, 0
    %p61 = por %p59, %p60
    %p62 = scmp.ne.s32.totalorder %s50, %s51
    %p63 = scmp.eq.s32.totalorder %s20, 1
    %p64 = por %p62, %p63
    %p66 = scmp.ne.s32.totalorder %s51, %s65
    %p67 = scmp.eq.s32.totalorder %s20, 0
    %p68 = por %p66, %p67
    %s70 = sadd.s32 %s69, 1
    %p73 = scmp.eq.s32.totalorder %s14, 1
    %p74 = scmp.ne.s32.totalorder %s69, %s71
    %p75 = scmp.eq.s32.totalorder %s14, 0
    %p76 = por %p74, %p75
    %p77 = scmp.ne.s32.totalorder %s69, %s71
    %p78 = scmp.eq.s32.totalorder %s19, 1
    %p79 = por %p77, %p78
    %p80 = scmp.ne.s32.totalorder %s71, %s72
    %p81 = scmp.eq.s32.totalorder %s19, 0
    %p82 = por %p80, %p81
    %p83 = scmp.ne.s32.totalorder %s71, %s72
    %p84 = scmp.eq.s32.totalorder %s20, 1
    %p85 = por %p83, %p84
    %p87 = scmp.ne.s32.totalorder %s72, %s86
    %p88 = scmp.eq.s32.totalorder %s20, 0
    %p89 = por %p87, %p88
    %s91 = sadd.s32 %s90, 1
    %p94 = scmp.eq.s32.totalorder %s14, 1
    %p95 = scmp.ne.s32.totalorder %s90, %s92
    %p96 = scmp.eq.s32.totalorder %s14, 0
    %p97 = por %p95, %p96
    %p98 = scmp.ne.s32.totalorder %s90, %s92
    %p99 = scmp.eq.s32.totalorder %s19, 1
    %p100 = por %p98, %p99
    %p101 = scmp.ne.s32.totalorder %s92, %s93
    %p102 = scmp.eq.s32.totalorder %s19, 0
    %p103 = por %p101, %p102
    %p104 = scmp.ne.s32.totalorder %s92, %s93
    %p105 = scmp.eq.s32.totalorder %s20, 1
    %p106 = por %p104, %p105
    %p108 = scmp.ne.s32.totalorder %s93, %s107
    %p109 = scmp.eq.s32.totalorder %s20, 0
    %p110 = por %p108, %p109
    %s112 = sadd.s32 %s111, 1
    %p115 = scmp.eq.s32.totalorder %s14, 1
    %p116 = scmp.ne.s32.totalorder %s111, %s113
    %p117 = scmp.eq.s32.totalorder %s14, 0
    %p118 = por %p116, %p117
    %p119 = scmp.ne.s32.totalorder %s111, %s113
    %p120 = scmp.eq.s32.totalorder %s19, 1
    %p121 = por %p119, %p120
    %p122 = scmp.ne.s32.totalorder %s113, %s114
    %p123 = scmp.eq.s32.totalorder %s19, 0
    %p124 = por %p122, %p123
    %p125 = scmp.ne.s32.totalorder %s113, %s114
    %p126 = scmp.eq.s32.totalorder %s20, 1
    %p127 = por %p125, %p126
    %p129 = scmp.ne.s32.totalorder %s114, %s128
    %p130 = scmp.eq.s32.totalorder %s20, 0
    %p131 = por %p129, %p130
    %s133 = sadd.s32 %s132, 1
    %p136 = scmp.eq.s32.totalorder %s14, 1
    %p137 = scmp.ne.s32.totalorder %s132, %s134
    %p138 = scmp.eq.s32.totalorder %s14, 0
    %p139 = por %p137, %p138
    %p140 = scmp.ne.s32.totalorder %s132, %s134
    %p141 = scmp.eq.s32.totalorder %s19, 1
    %p142 = por %p140, %p141
    %p143 = scmp.ne.s32.totalorder %s134, %s135
    %p144 = scmp.eq.s32.totalorder %s19, 0
    %p145 = por %p143, %p144
    %p146 = scmp.ne.s32.totalorder %s134, %s135
    %p147 = scmp.eq.s32.totalorder %s20, 1
    %p148 = por %p146, %p147
    %p150 = scmp.ne.s32.totalorder %s135, %s149
    %p151 = scmp.eq.s32.totalorder %s20, 0
    %p152 = por %p150, %p151
    %s154 = sadd.s32 %s153, 1
    %p157 = scmp.eq.s32.totalorder %s14, 1
    %p158 = scmp.ne.s32.totalorder %s153, %s155
    %p159 = scmp.eq.s32.totalorder %s14, 0
    %p160 = por %p158, %p159
    %p161 = scmp.ne.s32.totalorder %s153, %s155
    %p162 = scmp.eq.s32.totalorder %s19, 1
    %p163 = por %p161, %p162
    %p164 = scmp.ne.s32.totalorder %s155, %s156
    %p165 = scmp.eq.s32.totalorder %s19, 0
    %p166 = por %p164, %p165
    %p167 = scmp.ne.s32.totalorder %s155, %s156
    %p168 = scmp.eq.s32.totalorder %s20, 1
    %p169 = por %p167, %p168
    %p171 = scmp.ne.s32.totalorder %s156, %s170
    %p172 = scmp.eq.s32.totalorder %s20, 0
    %p173 = por %p171, %p172
    %s175 = sadd.s32 %s174, 1
    %p178 = scmp.eq.s32.totalorder %s14, 1
    %p179 = scmp.ne.s32.totalorder %s174, %s176
    %p180 = scmp.eq.s32.totalorder %s14, 0
    %p181 = por %p179, %p180
    %p182 = scmp.ne.s32.totalorder %s174, %s176
    %p183 = scmp.eq.s32.totalorder %s19, 1
    %p184 = por %p182, %p183
    %p185 = scmp.ne.s32.totalorder %s176, %s177
    %p186 = scmp.eq.s32.totalorder %s19, 0
    %p187 = por %p185, %p186
    %p188 = scmp.ne.s32.totalorder %s176, %s177
    %p189 = scmp.eq.s32.totalorder %s20, 1
    %p190 = por %p188, %p189
    %p192 = scmp.ne.s32.totalorder %s177, %s191
    %p193 = scmp.eq.s32.totalorder %s20, 0
    %p194 = por %p192, %p193
    %s195 = ssub.s32 %s14, %s21
    %p196 = scmp.eq.s32.totalorder %s195, 0
    %s198 = sadd.s32 %s197, 1
    %s199 = scalar_select %p196, %s197, %s198
    %p202 = pneg %p196
    %p203 = scmp.eq.s32.totalorder %s14, 1
    %p204 = por %p202, %p203
    %p205 = scmp.ne.s32.totalorder %s197, %s200
    %p206 = scmp.eq.s32.totalorder %s14, 0
    %p207 = por %p205, %p206
    %p208 = scmp.ne.s32.totalorder %s197, %s200
    %p209 = scmp.eq.s32.totalorder %s19, 1
    %p210 = por %p208, %p209
    %p211 = scmp.ne.s32.totalorder %s200, %s201
    %p212 = scmp.eq.s32.totalorder %s19, 0
    %p213 = por %p211, %p212
    %p214 = scmp.ne.s32.totalorder %s200, %s201
    %p215 = scmp.eq.s32.totalorder %s20, 1
    %p216 = por %p214, %p215
    %p218 = scmp.ne.s32.totalorder %s201, %s217
    %p219 = scmp.eq.s32.totalorder %s20, 0
    %p220 = por %p218, %p219
    %p221 = scmp.le.s32.totalorder 1, %s14
    %p222 = scmp.lt.s32.totalorder %s14, 3
    %p223 = pnand %p221, %p222
    %p224 = pneg %p223
    // Predicated region
    $region9: #{fnet_forward.4} parent=5 // pred_check
      _
    $region10: #{fnet_forward.4} parent=5 // pred_check_branch
      %226 = sbr.rel (%p223) target = $region12
    $region11: #{fnet_forward.4} parent=5 // pred_region
      %s227 = ssub.s32 %s14, 1
      // Predicated region
      $region13: #{fnet_forward.4} parent=11 // pred_check
        %p228 = pneg %p61
      $region14: #{fnet_forward.4} parent=11 // pred_check_branch
        %230 = sbr.rel (%p228) target = $region16
      $region15: #{fnet_forward.4} parent=11 // pred_region
        _
      $region16: #{fnet_forward.4} parent=11 // pred_fallthru
        _
      // Predicated region
      $region17: #{fnet_forward.4} parent=11 // pred_check
        %p231 = pneg %p82
      $region18: #{fnet_forward.4} parent=11 // pred_check_branch
        %233 = sbr.rel (%p231) target = $region20
      $region19: #{fnet_forward.4} parent=11 // pred_region
        _
      $region20: #{fnet_forward.4} parent=11 // pred_fallthru
        _
      // Predicated region
      $region21: #{fnet_forward.4} parent=11 // pred_check
        %p234 = pneg %p103
      $region22: #{fnet_forward.4} parent=11 // pred_check_branch
        %236 = sbr.rel (%p234) target = $region24
      $region23: #{fnet_forward.4} parent=11 // pred_region
        _
      $region24: #{fnet_forward.4} parent=11 // pred_fallthru
        _
      // Predicated region
      $region25: #{fnet_forward.4} parent=11 // pred_check
        %p237 = pneg %p124
      $region26: #{fnet_forward.4} parent=11 // pred_check_branch
        %239 = sbr.rel (%p237) target = $region28
      $region27: #{fnet_forward.4} parent=11 // pred_region
        _
      $region28: #{fnet_forward.4} parent=11 // pred_fallthru
        _
      // Predicated region
      $region29: #{fnet_forward.4} parent=11 // pred_check
        %p240 = pneg %p145
      $region30: #{fnet_forward.4} parent=11 // pred_check_branch
        %242 = sbr.rel (%p240) target = $region32
      $region31: #{fnet_forward.4} parent=11 // pred_region
        _
      $region32: #{fnet_forward.4} parent=11 // pred_fallthru
        _
      // Predicated region
      $region33: #{fnet_forward.4} parent=11 // pred_check
        %p243 = pneg %p166
      $region34: #{fnet_forward.4} parent=11 // pred_check_branch
        %245 = sbr.rel (%p243) target = $region36
      $region35: #{fnet_forward.4} parent=11 // pred_region
        _
      $region36: #{fnet_forward.4} parent=11 // pred_fallthru
        _
      // Predicated region
      $region37: #{fnet_forward.4} parent=11 // pred_check
        %p246 = pneg %p187
      $region38: #{fnet_forward.4} parent=11 // pred_check_branch
        %248 = sbr.rel (%p246) target = $region40
      $region39: #{fnet_forward.4} parent=11 // pred_region
        _
      $region40: #{fnet_forward.4} parent=11 // pred_fallthru
        _
    $region12: #{fnet_forward.4} parent=5 // pred_fallthru
      _
    %p249 = scmp.lt.s32.totalorder %s14, 2
    // Predicated region
    $region41: #{fnet_forward.4} parent=5 // pred_check
      %p250 = pneg %p249
    $region42: #{fnet_forward.4} parent=5 // pred_check_branch
      %252 = sbr.rel (%p250) target = $region44
    $region43: #{fnet_forward.4} parent=5 // pred_region
      // Predicated region
      $region45: #{fnet_forward.4} parent=43 // pred_check
        %p253 = pneg %p34
      $region46: #{fnet_forward.4} parent=43 // pred_check_branch
        %255 = sbr.rel (%p253) target = $region48
      $region47: #{fnet_forward.4} parent=43 // pred_region
        %p256 = scmp.lt.s32.totalorder %s14, 1
        %s257 = scalar_select %p256, %s14, 1
        %s258 = smul.addr %s257, 8
        %s259 = scalar_lea.vmem %s0, %s258
      $region48: #{fnet_forward.4} parent=43 // pred_fallthru
        _
    $region44: #{fnet_forward.4} parent=5 // pred_fallthru
      _
    %p260 = scmp.le.s32.totalorder 1, %s14
    %p261 = scmp.lt.s32.totalorder %s14, 3
    %p262 = pnand %p260, %p261
    %p263 = pneg %p262
    // Predicated region
    $region49: #{fnet_forward.4} parent=5 // pred_check
      _
    $region50: #{fnet_forward.4} parent=5 // pred_check_branch
      %265 = sbr.rel (%p262) target = $region52
    $region51: #{fnet_forward.4} parent=5 // pred_region
      %s266 = ssub.s32 %s14, 1
      %p267 = scmp.lt.s32.totalorder %s19, 1
      %s268 = scalar_select %p267, %s19, 1
      %s269 = smul.addr %s268, 8
      %s270 = scalar_lea.vmem %s0, %s269
      %p271 = pneg %p40
      %p272 = pneg %p37
      %p273 = pneg %p61
      %p274 = pneg %p58
      %p275 = pneg %p82
      %p276 = pneg %p79
      %p277 = pneg %p103
      %p278 = pneg %p100
      %p279 = pneg %p124
      %p280 = pneg %p121
      %p281 = pneg %p145
      %p282 = pneg %p142
      %p283 = pneg %p166
      %p284 = pneg %p163
      %p285 = pneg %p187
      %p286 = pneg %p184
      %p287 = pneg %p213
      %p288 = pneg %p210
      %p289 = scmp.lt.s32.totalorder %s19, 1
      %s290 = scalar_select %p289, %s19, 1
      %s291 = smul.addr %s290, 8
      %s292 = scalar_lea.vmem %s8, %s291
      %p293 = scmp.lt.s32.totalorder %s19, 1
      %s294 = scalar_select %p293, %s19, 1
      %s295 = smul.addr %s294, 8
      %s296 = scalar_lea.vmem %s0, %s295
      %p297 = scmp.lt.s32.totalorder %s19, 1
      %s298 = scalar_select %p297, %s19, 1
      %s299 = smul.addr %s298, 8
      %s300 = scalar_lea.vmem %s8, %s299
      %v301 = vld [vmem:[%s296] sm:$0xff]
      %v302 = vld [vmem:[%s2] sm:$0x1]
      %v303 = vld [vmem:[%s3] sm:$0x1]
      %v304 = vld [vmem:[%s1] sm:$0xff]
      %v305 = vld [vmem:[%s1 + $0x8] sm:$0xff]
      %v306 = vld [vmem:[%s1 + $0x10] sm:$0xff]
      %v307 = vld [vmem:[%s1 + $0x18] sm:$0xff]
      %v308 = vld [vmem:[%s1 + $0x20] sm:$0xff]
      %v309 = vld [vmem:[%s1 + $0x28] sm:$0xff]
      %v310 = vld [vmem:[%s1 + $0x30] sm:$0xff]
      %v311 = vld [vmem:[%s1 + $0x38] sm:$0xff]
      %v312 = vld [vmem:[%s1 + $0x40] sm:$0xff]
      %v313 = vld [vmem:[%s1 + $0x48] sm:$0xff]
      %v314 = vld [vmem:[%s1 + $0x50] sm:$0xff]
      %v315 = vld [vmem:[%s1 + $0x58] sm:$0xff]
      %v316 = vld [vmem:[%s1 + $0x60] sm:$0xff]
      %v317 = vld [vmem:[%s1 + $0x68] sm:$0xff]
      %v318 = vld [vmem:[%s1 + $0x70] sm:$0xff]
      %v319 = vld [vmem:[%s1 + $0x78] sm:$0xff]
      %320 = vmatprep.subr.mxu0 0.0
      %321 = vmatpush1.msra.mxu0 %v304
      %322 = vmatprep.subr.mxu0 0.0
      %323 = vmatpush1.msra.mxu0 %v305
      %324 = vmatprep.subr.mxu0 0.0
      %325 = vmatpush1.msra.mxu0 %v306
      %326 = vmatprep.subr.mxu0 0.0
      %327 = vmatpush1.msra.mxu0 %v307
      %328 = vmatprep.subr.mxu0 0.0
      %329 = vmatpush1.msra.mxu0 %v308
      %330 = vmatprep.subr.mxu0 0.0
      %331 = vmatpush1.msra.mxu0 %v309
      %332 = vmatprep.subr.mxu0 0.0
      %333 = vmatpush1.msra.mxu0 %v310
      %334 = vmatprep.subr.mxu0 0.0
      %335 = vmatpush1.msra.mxu0 %v311
      %336 = vmatprep.subr.mxu0 0.0
      %337 = vmatpush1.msra.mxu0 %v312
      %338 = vmatprep.subr.mxu0 0.0
      %339 = vmatpush1.msra.mxu0 %v313
      %340 = vmatprep.subr.mxu0 0.0
      %341 = vmatpush1.msra.mxu0 %v314
      %342 = vmatprep.subr.mxu0 0.0
      %343 = vmatpush1.msra.mxu0 %v315
      %344 = vmatprep.subr.mxu0 0.0
      %345 = vmatpush1.msra.mxu0 %v316
      %346 = vmatprep.subr.mxu0 0.0
      %347 = vmatpush1.msra.mxu0 %v317
      %348 = vmatprep.subr.mxu0 0.0
      %349 = vmatpush1.msra.mxu0 %v318
      %350 = vmatprep.subr.mxu0 0.0
      %351 = vmatpush1.msra.mxu0 %v319
      %352 = vmatprep.subr.mxu0 0.0
      %353 = vmatpush1.msra.mxu0 0.0
      %354 = vmatprep.subr.mxu0 0.0
      %355 = vmatpush1.msra.mxu0 0.0
      %356 = vmatprep.subr.mxu0 0.0
      %357 = vmatpush1.msra.mxu0 0.0
      %358 = vmatprep.subr.mxu0 0.0
      %359 = vmatpush1.msra.mxu0 0.0
      %360 = vmatprep.subr.mxu0 0.0
      %361 = vmatpush1.msra.mxu0 0.0
      %362 = vmatprep.subr.mxu0 0.0
      %363 = vmatpush1.msra.mxu0 0.0
      %364 = vmatprep.subr.mxu0 0.0
      %365 = vmatpush1.msra.mxu0 0.0
      %366 = vmatprep.subr.mxu0 0.0
      %367 = vmatpush1.msra.mxu0 0.0
      %368 = vmatprep.subr.mxu0 0.0
      %369 = vmatpush1.msra.mxu0 0.0
      %370 = vmatprep.subr.mxu0 0.0
      %371 = vmatpush1.msra.mxu0 0.0
      %372 = vmatprep.subr.mxu0 0.0
      %373 = vmatpush1.msra.mxu0 0.0
      %374 = vmatprep.subr.mxu0 0.0
      %375 = vmatpush1.msra.mxu0 0.0
      %376 = vmatprep.subr.mxu0 0.0
      %377 = vmatpush1.msra.mxu0 0.0
      %378 = vmatprep.subr.mxu0 0.0
      %379 = vmatpush1.msra.mxu0 0.0
      %380 = vmatprep.subr.mxu0 0.0
      %381 = vmatpush1.msra.mxu0 0.0
      %382 = vmatprep.subr.mxu0 0.0
      %383 = vmatpush1.msra.mxu0 0.0
      %384 = vmatprep.mubr.f32.mxu0 0.0
      %385 = vmatmul.mubr.f32.gmra.mrb[0].mxu0 %v301
      %v386 = vpop.f32.mrb[0].mxu0
      %v387 = vadd.f32 0.0, %v386
      %v388 = vpop.f32.mrb[0].mxu0
      %389 = vdwg.mxu0
      %390 = vadd.xlane.f32.xlu0 %v387
      %v391 = vpop.xlane.xlu0 %390
      %v392 = vrcp.pop 128.0
      %v393 = vmul.f32 %v391, %v392
      %v394 = vsub.f32 %v387, %v393
      %v395 = vmul.f32 %v394, %v394
      %396 = vadd.xlane.f32.xlu0 %v395
      %v397 = vpop.xlane.xlu0 %396
      %v398 = vmul.f32 %v397, %v392
      %v399 = vadd.f32 %v398, 1e-05
      %v400 = vrsqrt.pop %v399
      %v401 = vmul.f32 %v394, %v400
      %v403 = vlaneseq
      %v404 = vshrl.u32 %v403, 7
      %v405 = vsub.s32 0, %v404
      %v406 = vrot.slane %v302, %v405
      %v408 = vmul.f32 %v401, %v406
      %v410 = vlaneseq
      %v411 = vshrl.u32 %v410, 7
      %v412 = vsub.s32 0, %v411
      %v413 = vrot.slane %v303, %v412
      %v415 = vadd.f32 %v408, %v413
      %v416 = vld [vmem:[%s4] sm:$0xff]
      %v417 = vld [vmem:[%s4 + $0x8] sm:$0xff]
      %v418 = vld [vmem:[%s4 + $0x10] sm:$0xff]
      %v419 = vld [vmem:[%s4 + $0x18] sm:$0xff]
      %v420 = vld [vmem:[%s4 + $0x20] sm:$0xff]
      %v421 = vld [vmem:[%s4 + $0x28] sm:$0xff]
      %v422 = vld [vmem:[%s4 + $0x30] sm:$0xff]
      %v423 = vld [vmem:[%s4 + $0x38] sm:$0xff]
      %v424 = vld [vmem:[%s4 + $0x40] sm:$0xff]
      %v425 = vld [vmem:[%s4 + $0x48] sm:$0xff]
      %v426 = vld [vmem:[%s4 + $0x50] sm:$0xff]
      %v427 = vld [vmem:[%s4 + $0x58] sm:$0xff]
      %v428 = vld [vmem:[%s4 + $0x60] sm:$0xff]
      %v429 = vld [vmem:[%s4 + $0x68] sm:$0xff]
      %v430 = vld [vmem:[%s4 + $0x70] sm:$0xff]
      %v431 = vld [vmem:[%s4 + $0x78] sm:$0xff]
      %432 = vmatprep.subr.mxu0 0.0
      %433 = vmatpush1.msra.mxu0 %v416
      %434 = vmatprep.subr.mxu0 0.0
      %435 = vmatpush1.msra.mxu0 %v417
      %436 = vmatprep.subr.mxu0 0.0
      %437 = vmatpush1.msra.mxu0 %v418
      %438 = vmatprep.subr.mxu0 0.0
      %439 = vmatpush1.msra.mxu0 %v419
      %440 = vmatprep.subr.mxu0 0.0
      %441 = vmatpush1.msra.mxu0 %v420
      %442 = vmatprep.subr.mxu0 0.0
      %443 = vmatpush1.msra.mxu0 %v421
      %444 = vmatprep.subr.mxu0 0.0
      %445 = vmatpush1.msra.mxu0 %v422
      %446 = vmatprep.subr.mxu0 0.0
      %447 = vmatpush1.msra.mxu0 %v423
      %448 = vmatprep.subr.mxu0 0.0
      %449 = vmatpush1.msra.mxu0 %v424
      %450 = vmatprep.subr.mxu0 0.0
      %451 = vmatpush1.msra.mxu0 %v425
      %452 = vmatprep.subr.mxu0 0.0
      %453 = vmatpush1.msra.mxu0 %v426
      %454 = vmatprep.subr.mxu0 0.0
      %455 = vmatpush1.msra.mxu0 %v427
      %456 = vmatprep.subr.mxu0 0.0
      %457 = vmatpush1.msra.mxu0 %v428
      %458 = vmatprep.subr.mxu0 0.0
      %459 = vmatpush1.msra.mxu0 %v429
      %460 = vmatprep.subr.mxu0 0.0
      %461 = vmatpush1.msra.mxu0 %v430
      %462 = vmatprep.subr.mxu0 0.0
      %463 = vmatpush1.msra.mxu0 %v431
      %464 = vmatprep.subr.mxu0 0.0
      %465 = vmatpush1.msra.mxu0 0.0
      %466 = vmatprep.subr.mxu0 0.0
      %467 = vmatpush1.msra.mxu0 0.0
      %468 = vmatprep.subr.mxu0 0.0
      %469 = vmatpush1.msra.mxu0 0.0
      %470 = vmatprep.subr.mxu0 0.0
      %471 = vmatpush1.msra.mxu0 0.0
      %472 = vmatprep.subr.mxu0 0.0
      %473 = vmatpush1.msra.mxu0 0.0
      %474 = vmatprep.subr.mxu0 0.0
      %475 = vmatpush1.msra.mxu0 0.0
      %476 = vmatprep.subr.mxu0 0.0
      %477 = vmatpush1.msra.mxu0 0.0
      %478 = vmatprep.subr.mxu0 0.0
      %479 = vmatpush1.msra.mxu0 0.0
      %480 = vmatprep.subr.mxu0 0.0
      %481 = vmatpush1.msra.mxu0 0.0
      %482 = vmatprep.subr.mxu0 0.0
      %483 = vmatpush1.msra.mxu0 0.0
      %484 = vmatprep.subr.mxu0 0.0
      %485 = vmatpush1.msra.mxu0 0.0
      %486 = vmatprep.subr.mxu0 0.0
      %487 = vmatpush1.msra.mxu0 0.0
      %488 = vmatprep.subr.mxu0 0.0
      %489 = vmatpush1.msra.mxu0 0.0
      %490 = vmatprep.subr.mxu0 0.0
      %491 = vmatpush1.msra.mxu0 0.0
      %492 = vmatprep.subr.mxu0 0.0
      %493 = vmatpush1.msra.mxu0 0.0
      %494 = vmatprep.subr.mxu0 0.0
      %495 = vmatpush1.msra.mxu0 0.0
      %496 = vmatprep.mubr.f32.mxu0 0.0
      %497 = vmatmul.mubr.f32.gmra.mrb[0].mxu0 %v415
      %v498 = vpop.f32.mrb[0].mxu0
      %v499 = vadd.f32 0.0, %v498
      %v500 = vpop.f32.mrb[0].mxu0
      %501 = vdwg.mxu0
      %v502 = vmul.f32 %v499, 0.5
      %v503 = vmul.f32 %v499, 0.044715
      %v504 = vmul.f32 %v503, %v499
      %v505 = vmul.f32 %v504, %v499
      %v506 = vadd.f32 %v499, %v505
      %v507 = vmul.f32 %v506, 0.7978846
      %v508 = vtanh.pop %v507
      %v509 = vadd.f32 %v508, 1.0
      %v510 = vmul.f32 %v502, %v509
      %v511 = vld [vmem:[%s5] sm:$0xff]
      %v512 = vld [vmem:[%s5 + $0x8] sm:$0xff]
      %v513 = vld [vmem:[%s5 + $0x10] sm:$0xff]
      %v514 = vld [vmem:[%s5 + $0x18] sm:$0xff]
      %v515 = vld [vmem:[%s5 + $0x20] sm:$0xff]
      %v516 = vld [vmem:[%s5 + $0x28] sm:$0xff]
      %v517 = vld [vmem:[%s5 + $0x30] sm:$0xff]
      %v518 = vld [vmem:[%s5 + $0x38] sm:$0xff]
      %v519 = vld [vmem:[%s5 + $0x40] sm:$0xff]
      %v520 = vld [vmem:[%s5 + $0x48] sm:$0xff]
      %v521 = vld [vmem:[%s5 + $0x50] sm:$0xff]
      %v522 = vld [vmem:[%s5 + $0x58] sm:$0xff]
      %v523 = vld [vmem:[%s5 + $0x60] sm:$0xff]
      %v524 = vld [vmem:[%s5 + $0x68] sm:$0xff]
      %v525 = vld [vmem:[%s5 + $0x70] sm:$0xff]
      %v526 = vld [vmem:[%s5 + $0x78] sm:$0xff]
      %527 = vmatprep.subr.mxu0 0.0
      %528 = vmatpush1.msra.mxu0 %v511
      %529 = vmatprep.subr.mxu0 0.0
      %530 = vmatpush1.msra.mxu0 %v512
      %531 = vmatprep.subr.mxu0 0.0
      %532 = vmatpush1.msra.mxu0 %v513
      %533 = vmatprep.subr.mxu0 0.0
      %534 = vmatpush1.msra.mxu0 %v514
      %535 = vmatprep.subr.mxu0 0.0
      %536 = vmatpush1.msra.mxu0 %v515
      %537 = vmatprep.subr.mxu0 0.0
      %538 = vmatpush1.msra.mxu0 %v516
      %539 = vmatprep.subr.mxu0 0.0
      %540 = vmatpush1.msra.mxu0 %v517
      %541 = vmatprep.subr.mxu0 0.0
      %542 = vmatpush1.msra.mxu0 %v518
      %543 = vmatprep.subr.mxu0 0.0
      %544 = vmatpush1.msra.mxu0 %v519
      %545 = vmatprep.subr.mxu0 0.0
      %546 = vmatpush1.msra.mxu0 %v520
      %547 = vmatprep.subr.mxu0 0.0
      %548 = vmatpush1.msra.mxu0 %v521
      %549 = vmatprep.subr.mxu0 0.0
      %550 = vmatpush1.msra.mxu0 %v522
      %551 = vmatprep.subr.mxu0 0.0
      %552 = vmatpush1.msra.mxu0 %v523
      %553 = vmatprep.subr.mxu0 0.0
      %554 = vmatpush1.msra.mxu0 %v524
      %555 = vmatprep.subr.mxu0 0.0
      %556 = vmatpush1.msra.mxu0 %v525
      %557 = vmatprep.subr.mxu0 0.0
      %558 = vmatpush1.msra.mxu0 %v526
      %559 = vmatprep.subr.mxu0 0.0
      %560 = vmatpush1.msra.mxu0 0.0
      %561 = vmatprep.subr.mxu0 0.0
      %562 = vmatpush1.msra.mxu0 0.0
      %563 = vmatprep.subr.mxu0 0.0
      %564 = vmatpush1.msra.mxu0 0.0
      %565 = vmatprep.subr.mxu0 0.0
      %566 = vmatpush1.msra.mxu0 0.0
      %567 = vmatprep.subr.mxu0 0.0
      %568 = vmatpush1.msra.mxu0 0.0
      %569 = vmatprep.subr.mxu0 0.0
      %570 = vmatpush1.msra.mxu0 0.0
      %571 = vmatprep.subr.mxu0 0.0
      %572 = vmatpush1.msra.mxu0 0.0
      %573 = vmatprep.subr.mxu0 0.0
      %574 = vmatpush1.msra.mxu0 0.0
      %575 = vmatprep.subr.mxu0 0.0
      %576 = vmatpush1.msra.mxu0 0.0
      %577 = vmatprep.subr.mxu0 0.0
      %578 = vmatpush1.msra.mxu0 0.0
      %579 = vmatprep.subr.mxu0 0.0
      %580 = vmatpush1.msra.mxu0 0.0
      %581 = vmatprep.subr.mxu0 0.0
      %582 = vmatpush1.msra.mxu0 0.0
      %583 = vmatprep.subr.mxu0 0.0
      %584 = vmatpush1.msra.mxu0 0.0
      %585 = vmatprep.subr.mxu0 0.0
      %586 = vmatpush1.msra.mxu0 0.0
      %587 = vmatprep.subr.mxu0 0.0
      %588 = vmatpush1.msra.mxu0 0.0
      %589 = vmatprep.subr.mxu0 0.0
      %590 = vmatpush1.msra.mxu0 0.0
      %591 = vmatprep.mubr.f32.mxu0 0.0
      %592 = vmatmul.mubr.f32.gmra.mrb[0].mxu0 %v510
      %v593 = vpop.f32.mrb[0].mxu0
      %v594 = vadd.f32 0.0, %v593
      %v595 = vpop.f32.mrb[0].mxu0
      %596 = vdwg.mxu0
      %597 = vadd.xlane.f32.xlu0 %v594
      %v598 = vpop.xlane.xlu0 %597
      %v599 = vmul.f32 %v598, %v392
      %v600 = vsub.f32 %v594, %v599
      %v601 = vmul.f32 %v600, %v600
      %602 = vadd.xlane.f32.xlu0 %v601
      %v603 = vpop.xlane.xlu0 %602
      %v604 = vmul.f32 %v603, %v392
      %v605 = vadd.f32 %v604, 1e-05
      %v606 = vrsqrt.pop %v605
      %v607 = vmul.f32 %v600, %v606
      %v608 = vmul.f32 %v607, %v406
      %v609 = vadd.f32 %v608, %v413
      %v610 = vld [vmem:[%s6] sm:$0xff]
      %v611 = vld [vmem:[%s6 + $0x8] sm:$0xff]
      %v612 = vld [vmem:[%s6 + $0x10] sm:$0xff]
      %v613 = vld [vmem:[%s6 + $0x18] sm:$0xff]
      %v614 = vld [vmem:[%s6 + $0x20] sm:$0xff]
      %v615 = vld [vmem:[%s6 + $0x28] sm:$0xff]
      %v616 = vld [vmem:[%s6 + $0x30] sm:$0xff]
      %v617 = vld [vmem:[%s6 + $0x38] sm:$0xff]
      %v618 = vld [vmem:[%s6 + $0x40] sm:$0xff]
      %v619 = vld [vmem:[%s6 + $0x48] sm:$0xff]
      %v620 = vld [vmem:[%s6 + $0x50] sm:$0xff]
      %v621 = vld [vmem:[%s6 + $0x58] sm:$0xff]
      %v622 = vld [vmem:[%s6 + $0x60] sm:$0xff]
      %v623 = vld [vmem:[%s6 + $0x68] sm:$0xff]
      %v624 = vld [vmem:[%s6 + $0x70] sm:$0xff]
      %v625 = vld [vmem:[%s6 + $0x78] sm:$0xff]
      %626 = vmatprep.subr.mxu0 0.0
      %627 = vmatpush1.msra.mxu0 %v610
      %628 = vmatprep.subr.mxu0 0.0
      %629 = vmatpush1.msra.mxu0 %v611
      %630 = vmatprep.subr.mxu0 0.0
      %631 = vmatpush1.msra.mxu0 %v612
      %632 = vmatprep.subr.mxu0 0.0
      %633 = vmatpush1.msra.mxu0 %v613
      %634 = vmatprep.subr.mxu0 0.0
      %635 = vmatpush1.msra.mxu0 %v614
      %636 = vmatprep.subr.mxu0 0.0
      %637 = vmatpush1.msra.mxu0 %v615
      %638 = vmatprep.subr.mxu0 0.0
      %639 = vmatpush1.msra.mxu0 %v616
      %640 = vmatprep.subr.mxu0 0.0
      %641 = vmatpush1.msra.mxu0 %v617
      %642 = vmatprep.subr.mxu0 0.0
      %643 = vmatpush1.msra.mxu0 %v618
      %644 = vmatprep.subr.mxu0 0.0
      %645 = vmatpush1.msra.mxu0 %v619
      %646 = vmatprep.subr.mxu0 0.0
      %647 = vmatpush1.msra.mxu0 %v620
      %648 = vmatprep.subr.mxu0 0.0
      %649 = vmatpush1.msra.mxu0 %v621
      %650 = vmatprep.subr.mxu0 0.0
      %651 = vmatpush1.msra.mxu0 %v622
      %652 = vmatprep.subr.mxu0 0.0
      %653 = vmatpush1.msra.mxu0 %v623
      %654 = vmatprep.subr.mxu0 0.0
      %655 = vmatpush1.msra.mxu0 %v624
      %656 = vmatprep.subr.mxu0 0.0
      %657 = vmatpush1.msra.mxu0 %v625
      %658 = vmatprep.subr.mxu0 0.0
      %659 = vmatpush1.msra.mxu0 0.0
      %660 = vmatprep.subr.mxu0 0.0
      %661 = vmatpush1.msra.mxu0 0.0
      %662 = vmatprep.subr.mxu0 0.0
      %663 = vmatpush1.msra.mxu0 0.0
      %664 = vmatprep.subr.mxu0 0.0
      %665 = vmatpush1.msra.mxu0 0.0
      %666 = vmatprep.subr.mxu0 0.0
      %667 = vmatpush1.msra.mxu0 0.0
      %668 = vmatprep.subr.mxu0 0.0
      %669 = vmatpush1.msra.mxu0 0.0
      %670 = vmatprep.subr.mxu0 0.0
      %671 = vmatpush1.msra.mxu0 0.0
      %672 = vmatprep.subr.mxu0 0.0
      %673 = vmatpush1.msra.mxu0 0.0
      %674 = vmatprep.subr.mxu0 0.0
      %675 = vmatpush1.msra.mxu0 0.0
      %676 = vmatprep.subr.mxu0 0.0
      %677 = vmatpush1.msra.mxu0 0.0
      %678 = vmatprep.subr.mxu0 0.0
      %679 = vmatpush1.msra.mxu0 0.0
      %680 = vmatprep.subr.mxu0 0.0
      %681 = vmatpush1.msra.mxu0 0.0
      %682 = vmatprep.subr.mxu0 0.0
      %683 = vmatpush1.msra.mxu0 0.0
      %684 = vmatprep.subr.mxu0 0.0
      %685 = vmatpush1.msra.mxu0 0.0
      %686 = vmatprep.subr.mxu0 0.0
      %687 = vmatpush1.msra.mxu0 0.0
      %688 = vmatprep.subr.mxu0 0.0
      %689 = vmatpush1.msra.mxu0 0.0
      %690 = vmatprep.mubr.f32.mxu0 0.0
      %691 = vmatmul.mubr.f32.gmra.mrb[0].mxu0 %v609
      %v692 = vpop.f32.mrb[0].mxu0
      %v693 = vadd.f32 0.0, %v692
      %v694 = vpop.f32.mrb[0].mxu0
      %695 = vdwg.mxu0
      %v696 = vmul.f32 %v693, 0.5
      %v697 = vmul.f32 %v693, 0.044715
      %v698 = vmul.f32 %v697, %v693
      %v699 = vmul.f32 %v698, %v693
      %v700 = vadd.f32 %v693, %v699
      %v701 = vmul.f32 %v700, 0.7978846
      %v702 = vtanh.pop %v701
      %v703 = vadd.f32 %v702, 1.0
      %v704 = vmul.f32 %v696, %v703
      %v705 = vld [vmem:[%s7] sm:$0xff]
      %v706 = vld [vmem:[%s7 + $0x8] sm:$0xff]
      %v707 = vld [vmem:[%s7 + $0x10] sm:$0xff]
      %v708 = vld [vmem:[%s7 + $0x18] sm:$0xff]
      %v709 = vld [vmem:[%s7 + $0x20] sm:$0xff]
      %v710 = vld [vmem:[%s7 + $0x28] sm:$0xff]
      %v711 = vld [vmem:[%s7 + $0x30] sm:$0xff]
      %v712 = vld [vmem:[%s7 + $0x38] sm:$0xff]
      %v713 = vld [vmem:[%s7 + $0x40] sm:$0xff]
      %v714 = vld [vmem:[%s7 + $0x48] sm:$0xff]
      %v715 = vld [vmem:[%s7 + $0x50] sm:$0xff]
      %v716 = vld [vmem:[%s7 + $0x58] sm:$0xff]
      %v717 = vld [vmem:[%s7 + $0x60] sm:$0xff]
      %v718 = vld [vmem:[%s7 + $0x68] sm:$0xff]
      %v719 = vld [vmem:[%s7 + $0x70] sm:$0xff]
      %v720 = vld [vmem:[%s7 + $0x78] sm:$0xff]
      %721 = vmatprep.subr.mxu0 0.0
      %722 = vmatpush1.msra.mxu0 %v705
      %723 = vmatprep.subr.mxu0 0.0
      %724 = vmatpush1.msra.mxu0 %v706
      %725 = vmatprep.subr.mxu0 0.0
      %726 = vmatpush1.msra.mxu0 %v707
      %727 = vmatprep.subr.mxu0 0.0
      %728 = vmatpush1.msra.mxu0 %v708
      %729 = vmatprep.subr.mxu0 0.0
      %730 = vmatpush1.msra.mxu0 %v709
      %731 = vmatprep.subr.mxu0 0.0
      %732 = vmatpush1.msra.mxu0 %v710
      %733 = vmatprep.subr.mxu0 0.0
      %734 = vmatpush1.msra.mxu0 %v711
      %735 = vmatprep.subr.mxu0 0.0
      %736 = vmatpush1.msra.mxu0 %v712
      %737 = vmatprep.subr.mxu0 0.0
      %738 = vmatpush1.msra.mxu0 %v713
      %739 = vmatprep.subr.mxu0 0.0
      %740 = vmatpush1.msra.mxu0 %v714
      %741 = vmatprep.subr.mxu0 0.0
      %742 = vmatpush1.msra.mxu0 %v715
      %743 = vmatprep.subr.mxu0 0.0
      %744 = vmatpush1.msra.mxu0 %v716
      %745 = vmatprep.subr.mxu0 0.0
      %746 = vmatpush1.msra.mxu0 %v717
      %747 = vmatprep.subr.mxu0 0.0
      %748 = vmatpush1.msra.mxu0 %v718
      %749 = vmatprep.subr.mxu0 0.0
      %750 = vmatpush1.msra.mxu0 %v719
      %751 = vmatprep.subr.mxu0 0.0
      %752 = vmatpush1.msra.mxu0 %v720
      %753 = vmatprep.subr.mxu0 0.0
      %754 = vmatpush1.msra.mxu0 0.0
      %755 = vmatprep.subr.mxu0 0.0
      %756 = vmatpush1.msra.mxu0 0.0
      %757 = vmatprep.subr.mxu0 0.0
      %758 = vmatpush1.msra.mxu0 0.0
      %759 = vmatprep.subr.mxu0 0.0
      %760 = vmatpush1.msra.mxu0 0.0
      %761 = vmatprep.subr.mxu0 0.0
      %762 = vmatpush1.msra.mxu0 0.0
      %763 = vmatprep.subr.mxu0 0.0
      %764 = vmatpush1.msra.mxu0 0.0
      %765 = vmatprep.subr.mxu0 0.0
      %766 = vmatpush1.msra.mxu0 0.0
      %767 = vmatprep.subr.mxu0 0.0
      %768 = vmatpush1.msra.mxu0 0.0
      %769 = vmatprep.subr.mxu0 0.0
      %770 = vmatpush1.msra.mxu0 0.0
      %771 = vmatprep.subr.mxu0 0.0
      %772 = vmatpush1.msra.mxu0 0.0
      %773 = vmatprep.subr.mxu0 0.0
      %774 = vmatpush1.msra.mxu0 0.0
      %775 = vmatprep.subr.mxu0 0.0
      %776 = vmatpush1.msra.mxu0 0.0
      %777 = vmatprep.subr.mxu0 0.0
      %778 = vmatpush1.msra.mxu0 0.0
      %779 = vmatprep.subr.mxu0 0.0
      %780 = vmatpush1.msra.mxu0 0.0
      %781 = vmatprep.subr.mxu0 0.0
      %782 = vmatpush1.msra.mxu0 0.0
      %783 = vmatprep.subr.mxu0 0.0
      %784 = vmatpush1.msra.mxu0 0.0
      %785 = vmatprep.mubr.f32.mxu0 0.0
      %786 = vmatmul.mubr.f32.gmra.mrb[0].mxu0 %v704
      %v787 = vpop.f32.mrb[0].mxu0
      %v788 = vadd.f32 0.0, %v787
      %v789 = vpop.f32.mrb[0].mxu0
      %790 = vdwg.mxu0
      %791 = vst [vmem:[%s300] sm:$0xff] %v788
      %p792 = scmp.lt.s32.totalorder %s19, 1
      %s793 = scalar_select %p792, %s19, 1
      %s794 = smul.addr %s793, 8
      %s795 = scalar_lea.vmem %s8, %s794
      // Predicated region
      $region53: #{fnet_forward.4} parent=51 // pred_check
        %p796 = pneg %p210
      $region54: #{fnet_forward.4} parent=51 // pred_check_branch
        %798 = sbr.rel (%p796) target = $region56
      $region55: #{fnet_forward.4} parent=51 // pred_region
        _
      $region56: #{fnet_forward.4} parent=51 // pred_fallthru
        _
    $region52: #{fnet_forward.4} parent=5 // pred_fallthru
      _
    %p799 = scmp.le.s32.totalorder 2, %s14
    // Predicated region
    $region57: #{fnet_forward.4} parent=5 // pred_check
      %p800 = pneg %p799
    $region58: #{fnet_forward.4} parent=5 // pred_check_branch
      %802 = sbr.rel (%p800) target = $region60
    $region59: #{fnet_forward.4} parent=5 // pred_region
      %s803 = ssub.s32 %s14, 2
      // Predicated region
      $region61: #{fnet_forward.4} parent=59 // pred_check
        %p804 = pneg %p216
      $region62: #{fnet_forward.4} parent=59 // pred_check_branch
        %806 = sbr.rel (%p804) target = $region64
      $region63: #{fnet_forward.4} parent=59 // pred_region
        %p807 = scmp.lt.s32.totalorder %s20, 1
        %s808 = scalar_select %p807, %s20, 1
        %s809 = smul.addr %s808, 8
        %s810 = scalar_lea.vmem %s8, %s809
      $region64: #{fnet_forward.4} parent=59 // pred_fallthru
        _
    $region60: #{fnet_forward.4} parent=5 // pred_fallthru
      _
  $region6: #{fnet_forward.4} parent=0 // loop_footer
    %s18 = sadd.s32 1, %s14
  $region7: #{fnet_forward.4} parent=0 // loop_footer_branch
    %13 = sbr.rel target = $region3
  $region8: #{fnet_forward.4} parent=0 // loop_exit
    _

// kernel: fnet_forward.3
$region0: #{fnet_forward.3}
  #allocation0 [shape = 'u32[]', space=smem, size = 0x4, offset = 0x4, fixed_abs, tag = 'smem constant byte address 0x4 - core index']
  #allocation1 [shape = 'u32[144,128]{1,0:T(1,128)}', space=vmem, size = 0x12000, scoped, tag = 'internal scratch']
  %s0 = inlined_call_operand.vmem [shape: f32[16,128], index: 0, kind: input, shape index: {}]
  %s1 = inlined_call_operand.vmem [shape: f32[128,128], index: 1, kind: input, shape index: {}]
  %s2 = inlined_call_operand.vmem [shape: f32[1,128], index: 2, kind: input, shape index: {}]
  %s3 = inlined_call_operand.vmem [shape: f32[1,128], index: 3, kind: input, shape index: {}]
  %s4 = inlined_call_operand.vmem [shape: f32[128,128], index: 4, kind: input, shape index: {}]
  %s5 = inlined_call_operand.hbm [shape: f32[128,128], index: 5, kind: input, shape index: {}]
  %s6 = inlined_call_operand.hbm [shape: f32[128,128], index: 6, kind: input, shape index: {}]
  %s7 = inlined_call_operand.hbm [shape: f32[128,128], index: 7, kind: input, shape index: {}]
  %s8 = inlined_call_operand.vmem [shape: f32[16,128], index: 8, kind: output, shape index: {}]
  %s9 = sld [smem:[#allocation0]]
  $region77: #{fnet_forward.3} parent=0
    _
  %s11 = ssub.s32 1, %s9
  %s12 = scalar_select 0, %s11, %s9
  $region1: #{fnet_forward.3} parent=0
    #allocation2 [shape = 'u8[65536]{0}', space=vmem, size = 0x10000, scoped, tag = 'input window, operand 5, single buffered']
    #allocation3 [shape = 's32[2]{0}', space=sflag, size = 0x8, scoped, tag = 'scoped memory for fnet_forward.3']
    #allocation4 [shape = 'u8[65536]{0}', space=vmem, size = 0x10000, scoped, tag = 'input window, operand 6, single buffered']
    #allocation5 [shape = 's32[1]{0}', space=sflag, size = 0x4, scoped, tag = 'scoped memory for fnet_forward.3']
    #allocation6 [shape = 'u8[65536]{0}', space=vmem, size = 0x10000, scoped, tag = 'input window, operand 7, single buffered']
    %13 = vsyncpa [#allocation3], 0
    %14 = vsyncpa [#allocation5], 0
    loop: start=0, step=1, limit=4
    $region2: #{fnet_forward.3} parent=1 // loop_pre_header
      _
    $region3: #{fnet_forward.3} parent=1 // loop_header
      %s16 = sphi 0, %s20
      %p17 = scmp.ge.s32.totalorder %s16, 4
      %s26 = sphi 0, %s28
      %s29 = sphi 0, %s26
      %s30 = sphi 0, %s29
      %s46 = sphi 0, %s30
      %s50 = sphi 0, %s50
      %s52 = sphi 0, %s50
      %s53 = sphi 0, %s52
      %s67 = sphi 0, %s53
      %s71 = sphi 0, %s71
      %s73 = sphi 0, %s71
      %s74 = sphi 0, %s73
      %s88 = sphi 0, %s74
      %s92 = sphi 0, %s92
      %s94 = sphi 0, %s92
      %s95 = sphi 0, %s94
      %s109 = sphi 0, %s95
      %s113 = sphi 0, %s113
      %s115 = sphi 0, %s113
      %s116 = sphi 0, %s115
      %s130 = sphi 0, %s116
      %s134 = sphi 0, %s134
      %s136 = sphi 0, %s134
      %s137 = sphi 0, %s136
      %s151 = sphi 0, %s137
      %s155 = sphi 0, %s155
      %s157 = sphi 0, %s155
      %s158 = sphi 0, %s157
      %s172 = sphi 0, %s158
      %s176 = sphi 0, %s176
      %s178 = sphi 0, %s176
      %s179 = sphi 0, %s178
      %s193 = sphi 0, %s179
      %s199 = sphi 0, %s201
      %s202 = sphi 0, %s199
      %s203 = sphi 0, %s202
      %s219 = sphi 0, %s203
    $region4: #{fnet_forward.3} parent=1 // loop_header_branch
      %19 = sbr.rel (%p17) target = $region8
    $region5: #{fnet_forward.3} parent=1 // loop_body
      %s21 = ssub.s32 %s16, 1
      %s22 = ssub.s32 %s16, 2
      %s23 = sadd.s32 %s16, 1
      %s24 = ssub.s32 %s16, %s23
      %p25 = scmp.eq.s32.totalorder %s24, 0
      %s27 = sadd.s32 %s26, 1
      %s28 = scalar_select %p25, %s26, %s27
      %p31 = pneg %p25
      %p32 = scmp.eq.s32.totalorder %s16, 1
      %p33 = por %p31, %p32
      %p34 = scmp.ne.s32.totalorder %s26, %s29
      %p35 = scmp.eq.s32.totalorder %s16, 0
      %p36 = por %p34, %p35
      %p37 = scmp.ne.s32.totalorder %s26, %s29
      %p38 = scmp.eq.s32.totalorder %s21, 1
      %p39 = por %p37, %p38
      %p40 = scmp.ne.s32.totalorder %s29, %s30
      %p41 = scmp.eq.s32.totalorder %s21, 0
      %p42 = por %p40, %p41
      %p43 = scmp.ne.s32.totalorder %s29, %s30
      %p44 = scmp.eq.s32.totalorder %s22, 1
      %p45 = por %p43, %p44
      %p47 = scmp.ne.s32.totalorder %s30, %s46
      %p48 = scmp.eq.s32.totalorder %s22, 0
      %p49 = por %p47, %p48
      %s51 = sadd.s32 %s50, 1
      %p54 = scmp.eq.s32.totalorder %s16, 1
      %p55 = scmp.ne.s32.totalorder %s50, %s52
      %p56 = scmp.eq.s32.totalorder %s16, 0
      %p57 = por %p55, %p56
      %p58 = scmp.ne.s32.totalorder %s50, %s52
      %p59 = scmp.eq.s32.totalorder %s21, 1
      %p60 = por %p58, %p59
      %p61 = scmp.ne.s32.totalorder %s52, %s53
      %p62 = scmp.eq.s32.totalorder %s21, 0
      %p63 = por %p61, %p62
      %p64 = scmp.ne.s32.totalorder %s52, %s53
      %p65 = scmp.eq.s32.totalorder %s22, 1
      %p66 = por %p64, %p65
      %p68 = scmp.ne.s32.totalorder %s53, %s67
      %p69 = scmp.eq.s32.totalorder %s22, 0
      %p70 = por %p68, %p69
      %s72 = sadd.s32 %s71, 1
      %p75 = scmp.eq.s32.totalorder %s16, 1
      %p76 = scmp.ne.s32.totalorder %s71, %s73
      %p77 = scmp.eq.s32.totalorder %s16, 0
      %p78 = por %p76, %p77
      %p79 = scmp.ne.s32.totalorder %s71, %s73
      %p80 = scmp.eq.s32.totalorder %s21, 1
      %p81 = por %p79, %p80
      %p82 = scmp.ne.s32.totalorder %s73, %s74
      %p83 = scmp.eq.s32.totalorder %s21, 0
      %p84 = por %p82, %p83
      %p85 = scmp.ne.s32.totalorder %s73, %s74
      %p86 = scmp.eq.s32.totalorder %s22, 1
      %p87 = por %p85, %p86
      %p89 = scmp.ne.s32.totalorder %s74, %s88
      %p90 = scmp.eq.s32.totalorder %s22, 0
      %p91 = por %p89, %p90
      %s93 = sadd.s32 %s92, 1
      %p96 = scmp.eq.s32.totalorder %s16, 1
      %p97 = scmp.ne.s32.totalorder %s92, %s94
      %p98 = scmp.eq.s32.totalorder %s16, 0
      %p99 = por %p97, %p98
      %p100 = scmp.ne.s32.totalorder %s92, %s94
      %p101 = scmp.eq.s32.totalorder %s21, 1
      %p102 = por %p100, %p101
      %p103 = scmp.ne.s32.totalorder %s94, %s95
      %p104 = scmp.eq.s32.totalorder %s21, 0
      %p105 = por %p103, %p104
      %p106 = scmp.ne.s32.totalorder %s94, %s95
      %p107 = scmp.eq.s32.totalorder %s22, 1
      %p108 = por %p106, %p107
      %p110 = scmp.ne.s32.totalorder %s95, %s109
      %p111 = scmp.eq.s32.totalorder %s22, 0
      %p112 = por %p110, %p111
      %s114 = sadd.s32 %s113, 1
      %p117 = scmp.eq.s32.totalorder %s16, 1
      %p118 = scmp.ne.s32.totalorder %s113, %s115
      %p119 = scmp.eq.s32.totalorder %s16, 0
      %p120 = por %p118, %p119
      %p121 = scmp.ne.s32.totalorder %s113, %s115
      %p122 = scmp.eq.s32.totalorder %s21, 1
      %p123 = por %p121, %p122
      %p124 = scmp.ne.s32.totalorder %s115, %s116
      %p125 = scmp.eq.s32.totalorder %s21, 0
      %p126 = por %p124, %p125
      %p127 = scmp.ne.s32.totalorder %s115, %s116
      %p128 = scmp.eq.s32.totalorder %s22, 1
      %p129 = por %p127, %p128
      %p131 = scmp.ne.s32.totalorder %s116, %s130
      %p132 = scmp.eq.s32.totalorder %s22, 0
      %p133 = por %p131, %p132
      %s135 = sadd.s32 %s134, 1
      %p138 = scmp.eq.s32.totalorder %s16, 1
      %p139 = scmp.ne.s32.totalorder %s134, %s136
      %p140 = scmp.eq.s32.totalorder %s16, 0
      %p141 = por %p139, %p140
      %p142 = scmp.ne.s32.totalorder %s134, %s136
      %p143 = scmp.eq.s32.totalorder %s21, 1
      %p144 = por %p142, %p143
      %p145 = scmp.ne.s32.totalorder %s136, %s137
      %p146 = scmp.eq.s32.totalorder %s21, 0
      %p147 = por %p145, %p146
      %p148 = scmp.ne.s32.totalorder %s136, %s137
      %p149 = scmp.eq.s32.totalorder %s22, 1
      %p150 = por %p148, %p149
      %p152 = scmp.ne.s32.totalorder %s137, %s151
      %p153 = scmp.eq.s32.totalorder %s22, 0
      %p154 = por %p152, %p153
      %s156 = sadd.s32 %s155, 1
      %p159 = scmp.eq.s32.totalorder %s16, 1
      %p160 = scmp.ne.s32.totalorder %s155, %s157
      %p161 = scmp.eq.s32.totalorder %s16, 0
      %p162 = por %p160, %p161
      %p163 = scmp.ne.s32.totalorder %s155, %s157
      %p164 = scmp.eq.s32.totalorder %s21, 1
      %p165 = por %p163, %p164
      %p166 = scmp.ne.s32.totalorder %s157, %s158
      %p167 = scmp.eq.s32.totalorder %s21, 0
      %p168 = por %p166, %p167
      %p169 = scmp.ne.s32.totalorder %s157, %s158
      %p170 = scmp.eq.s32.totalorder %s22, 1
      %p171 = por %p169, %p170
      %p173 = scmp.ne.s32.totalorder %s158, %s172
      %p174 = scmp.eq.s32.totalorder %s22, 0
      %p175 = por %p173, %p174
      %s177 = sadd.s32 %s176, 1
      %p180 = scmp.eq.s32.totalorder %s16, 1
      %p181 = scmp.ne.s32.totalorder %s176, %s178
      %p182 = scmp.eq.s32.totalorder %s16, 0
      %p183 = por %p181, %p182
      %p184 = scmp.ne.s32.totalorder %s176, %s178
      %p185 = scmp.eq.s32.totalorder %s21, 1
      %p186 = por %p184, %p185
      %p187 = scmp.ne.s32.totalorder %s178, %s179
      %p188 = scmp.eq.s32.totalorder %s21, 0
      %p189 = por %p187, %p188
      %p190 = scmp.ne.s32.totalorder %s178, %s179
      %p191 = scmp.eq.s32.totalorder %s22, 1
      %p192 = por %p190, %p191
      %p194 = scmp.ne.s32.totalorder %s179, %s193
      %p195 = scmp.eq.s32.totalorder %s22, 0
      %p196 = por %p194, %p195
      %s197 = ssub.s32 %s16, %s23
      %p198 = scmp.eq.s32.totalorder %s197, 0
      %s200 = sadd.s32 %s199, 1
      %s201 = scalar_select %p198, %s199, %s200
      %p204 = pneg %p198
      %p205 = scmp.eq.s32.totalorder %s16, 1
      %p206 = por %p204, %p205
      %p207 = scmp.ne.s32.totalorder %s199, %s202
      %p208 = scmp.eq.s32.totalorder %s16, 0
      %p209 = por %p207, %p208
      %p210 = scmp.ne.s32.totalorder %s199, %s202
      %p211 = scmp.eq.s32.totalorder %s21, 1
      %p212 = por %p210, %p211
      %p213 = scmp.ne.s32.totalorder %s202, %s203
      %p214 = scmp.eq.s32.totalorder %s21, 0
      %p215 = por %p213, %p214
      %p216 = scmp.ne.s32.totalorder %s202, %s203
      %p217 = scmp.eq.s32.totalorder %s22, 1
      %p218 = por %p216, %p217
      %p220 = scmp.ne.s32.totalorder %s203, %s219
      %p221 = scmp.eq.s32.totalorder %s22, 0
      %p222 = por %p220, %p221
      %p223 = scmp.le.s32.totalorder 1, %s16
      %p224 = scmp.lt.s32.totalorder %s16, 3
      %p225 = pnand %p223, %p224
      %p226 = pneg %p225
      // Predicated region
      $region9: #{fnet_forward.3} parent=5 // pred_check
        _
      $region10: #{fnet_forward.3} parent=5 // pred_check_branch
        %228 = sbr.rel (%p225) target = $region12
      $region11: #{fnet_forward.3} parent=5 // pred_region
        %s229 = ssub.s32 %s16, 1
        // Predicated region
        $region13: #{fnet_forward.3} parent=11 // pred_check
          %p230 = pneg %p63
        $region14: #{fnet_forward.3} parent=11 // pred_check_branch
          %232 = sbr.rel (%p230) target = $region16
        $region15: #{fnet_forward.3} parent=11 // pred_region
          _
        $region16: #{fnet_forward.3} parent=11 // pred_fallthru
          _
        // Predicated region
        $region17: #{fnet_forward.3} parent=11 // pred_check
          %p233 = pneg %p84
        $region18: #{fnet_forward.3} parent=11 // pred_check_branch
          %235 = sbr.rel (%p233) target = $region20
        $region19: #{fnet_forward.3} parent=11 // pred_region
          _
        $region20: #{fnet_forward.3} parent=11 // pred_fallthru
          _
        // Predicated region
        $region21: #{fnet_forward.3} parent=11 // pred_check
          %p236 = pneg %p105
        $region22: #{fnet_forward.3} parent=11 // pred_check_branch
          %238 = sbr.rel (%p236) target = $region24
        $region23: #{fnet_forward.3} parent=11 // pred_region
          _
        $region24: #{fnet_forward.3} parent=11 // pred_fallthru
          _
        // Predicated region
        $region25: #{fnet_forward.3} parent=11 // pred_check
          %p239 = pneg %p126
        $region26: #{fnet_forward.3} parent=11 // pred_check_branch
          %241 = sbr.rel (%p239) target = $region28
        $region27: #{fnet_forward.3} parent=11 // pred_region
          _
        $region28: #{fnet_forward.3} parent=11 // pred_fallthru
          _
        // Predicated region
        $region29: #{fnet_forward.3} parent=11 // pred_check
          %p242 = pneg %p147
        $region30: #{fnet_forward.3} parent=11 // pred_check_branch
          %244 = sbr.rel (%p242) target = $region32
        $region31: #{fnet_forward.3} parent=11 // pred_region
          %s246 = ssub.s32 2048, 2048
          %247 = vsyncadd [#allocation3], %s246
          %s248 = sshll.u32 [#allocation2], 4
          %s249 = int_to_ptr.vmem [resolvable:$true] %s248
          %254 = dma.hbm_to_vmem [thread:$0]  %s5, 2048, %s249, [#allocation3], 128, 128, 8
        $region32: #{fnet_forward.3} parent=11 // pred_fallthru
          _
        // Predicated region
        $region33: #{fnet_forward.3} parent=11 // pred_check
          %p255 = pneg %p168
        $region34: #{fnet_forward.3} parent=11 // pred_check_branch
          %257 = sbr.rel (%p255) target = $region36
        $region35: #{fnet_forward.3} parent=11 // pred_region
          %s259 = ssub.s32 2048, 2048
          %260 = vsyncadd [#allocation5], %s259
          %s261 = sshll.u32 [#allocation4], 4
          %s262 = int_to_ptr.vmem [resolvable:$true] %s261
          %267 = dma.hbm_to_vmem [thread:$0]  %s6, 2048, %s262, [#allocation5], 128, 128, 8
        $region36: #{fnet_forward.3} parent=11 // pred_fallthru
          _
        // Predicated region
        $region37: #{fnet_forward.3} parent=11 // pred_check
          %p268 = pneg %p189
        $region38: #{fnet_forward.3} parent=11 // pred_check_branch
          %270 = sbr.rel (%p268) target = $region40
        $region39: #{fnet_forward.3} parent=11 // pred_region
          %s272 = ssub.s32 2048, 2048
          %273 = vsyncadd [#allocation5], %s272
          %s274 = sshll.u32 [#allocation6], 4
          %s275 = int_to_ptr.vmem [resolvable:$true] %s274
          %280 = dma.hbm_to_vmem [thread:$0]  %s7, 2048, %s275, [#allocation5], 128, 128, 8
        $region40: #{fnet_forward.3} parent=11 // pred_fallthru
          _
      $region12: #{fnet_forward.3} parent=5 // pred_fallthru
        _
      %p281 = scmp.lt.s32.totalorder %s16, 2
      // Predicated region
      $region41: #{fnet_forward.3} parent=5 // pred_check
        %p282 = pneg %p281
      $region42: #{fnet_forward.3} parent=5 // pred_check_branch
        %284 = sbr.rel (%p282) target = $region44
      $region43: #{fnet_forward.3} parent=5 // pred_region
        // Predicated region
        $region45: #{fnet_forward.3} parent=43 // pred_check
          %p285 = pneg %p36
        $region46: #{fnet_forward.3} parent=43 // pred_check_branch
          %287 = sbr.rel (%p285) target = $region48
        $region47: #{fnet_forward.3} parent=43 // pred_region
          %p288 = scmp.lt.s32.totalorder %s16, 1
          %s289 = scalar_select %p288, %s16, 1
          %s290 = smul.addr %s289, 8
          %s291 = scalar_lea.vmem %s0, %s290
        $region48: #{fnet_forward.3} parent=43 // pred_fallthru
          _
      $region44: #{fnet_forward.3} parent=5 // pred_fallthru
        _
      %p292 = scmp.le.s32.totalorder 1, %s16
      %p293 = scmp.lt.s32.totalorder %s16, 3
      %p294 = pnand %p292, %p293
      %p295 = pneg %p294
      // Predicated region
      $region49: #{fnet_forward.3} parent=5 // pred_check
        _
      $region50: #{fnet_forward.3} parent=5 // pred_check_branch
        %297 = sbr.rel (%p294) target = $region52
      $region51: #{fnet_forward.3} parent=5 // pred_region
        %s298 = ssub.s32 %s16, 1
        // Predicated region
        $region53: #{fnet_forward.3} parent=51 // pred_check
          %p299 = pneg %p147
        $region54: #{fnet_forward.3} parent=51 // pred_check_branch
          %301 = sbr.rel (%p299) target = $region56
        $region55: #{fnet_forward.3} parent=51 // pred_region
          %302 = dma.done [#allocation3], 2048
        $region56: #{fnet_forward.3} parent=51 // pred_fallthru
          _
        // Predicated region
        $region57: #{fnet_forward.3} parent=51 // pred_check
          %p303 = pneg %p168
        $region58: #{fnet_forward.3} parent=51 // pred_check_branch
          %305 = sbr.rel (%p303) target = $region60
        $region59: #{fnet_forward.3} parent=51 // pred_region
          %306 = dma.done [#allocation5], 2048
        $region60: #{fnet_forward.3} parent=51 // pred_fallthru
          _
        // Predicated region
        $region61: #{fnet_forward.3} parent=51 // pred_check
          %p307 = pneg %p189
        $region62: #{fnet_forward.3} parent=51 // pred_check_branch
          %309 = sbr.rel (%p307) target = $region64
        $region63: #{fnet_forward.3} parent=51 // pred_region
          %310 = dma.done [#allocation5], 2048
        $region64: #{fnet_forward.3} parent=51 // pred_fallthru
          _
        %p311 = scmp.lt.s32.totalorder %s21, 1
        %s312 = scalar_select %p311, %s21, 1
        %s313 = smul.addr %s312, 8
        %s314 = scalar_lea.vmem %s0, %s313
        %p315 = pneg %p42
        %p316 = pneg %p39
        %p317 = pneg %p63
        %p318 = pneg %p60
        %p319 = pneg %p84
        %p320 = pneg %p81
        %p321 = pneg %p105
        %p322 = pneg %p102
        %p323 = pneg %p126
        %p324 = pneg %p123
        %p325 = pneg %p147
        %p326 = pneg %p144
        %p327 = pneg %p168
        %p328 = pneg %p165
        %p329 = pneg %p189
        %p330 = pneg %p186
        %p331 = pneg %p215
        %p332 = pneg %p212
        %p333 = scmp.lt.s32.totalorder %s21, 1
        %s334 = scalar_select %p333, %s21, 1
        %s335 = smul.addr %s334, 8
        %s336 = scalar_lea.vmem %s8, %s335
        %p337 = scmp.lt.s32.totalorder %s21, 1
        %s338 = scalar_select %p337, %s21, 1
        %s339 = smul.addr %s338, 8
        %s340 = scalar_lea.vmem %s0, %s339
        %p341 = scmp.lt.s32.totalorder %s21, 1
        %s342 = scalar_select %p341, %s21, 1
        %s343 = smul.addr %s342, 8
        %s344 = scalar_lea.vmem %s8, %s343
        %v345 = vld [vmem:[%s340] sm:$0xff]
        %v346 = vld [vmem:[%s2] sm:$0x1]
        %v347 = vld [vmem:[%s3] sm:$0x1]
        %v348 = vld [vmem:[%s1] sm:$0xff]
        %v349 = vld [vmem:[%s1 + $0x8] sm:$0xff]
        %v350 = vld [vmem:[%s1 + $0x10] sm:$0xff]
        %v351 = vld [vmem:[%s1 + $0x18] sm:$0xff]
        %v352 = vld [vmem:[%s1 + $0x20] sm:$0xff]
        %v353 = vld [vmem:[%s1 + $0x28] sm:$0xff]
        %v354 = vld [vmem:[%s1 + $0x30] sm:$0xff]
        %v355 = vld [vmem:[%s1 + $0x38] sm:$0xff]
        %v356 = vld [vmem:[%s1 + $0x40] sm:$0xff]
        %v357 = vld [vmem:[%s1 + $0x48] sm:$0xff]
        %v358 = vld [vmem:[%s1 + $0x50] sm:$0xff]
        %v359 = vld [vmem:[%s1 + $0x58] sm:$0xff]
        %v360 = vld [vmem:[%s1 + $0x60] sm:$0xff]
        %v361 = vld [vmem:[%s1 + $0x68] sm:$0xff]
        %v362 = vld [vmem:[%s1 + $0x70] sm:$0xff]
        %v363 = vld [vmem:[%s1 + $0x78] sm:$0xff]
        %364 = vmatprep.subr.mxu0 0.0
        %365 = vmatpush1.msra.mxu0 %v348
        %366 = vmatprep.subr.mxu0 0.0
        %367 = vmatpush1.msra.mxu0 %v349
        %368 = vmatprep.subr.mxu0 0.0
        %369 = vmatpush1.msra.mxu0 %v350
        %370 = vmatprep.subr.mxu0 0.0
        %371 = vmatpush1.msra.mxu0 %v351
        %372 = vmatprep.subr.mxu0 0.0
        %373 = vmatpush1.msra.mxu0 %v352
        %374 = vmatprep.subr.mxu0 0.0
        %375 = vmatpush1.msra.mxu0 %v353
        %376 = vmatprep.subr.mxu0 0.0
        %377 = vmatpush1.msra.mxu0 %v354
        %378 = vmatprep.subr.mxu0 0.0
        %379 = vmatpush1.msra.mxu0 %v355
        %380 = vmatprep.subr.mxu0 0.0
        %381 = vmatpush1.msra.mxu0 %v356
        %382 = vmatprep.subr.mxu0 0.0
        %383 = vmatpush1.msra.mxu0 %v357
        %384 = vmatprep.subr.mxu0 0.0
        %385 = vmatpush1.msra.mxu0 %v358
        %386 = vmatprep.subr.mxu0 0.0
        %387 = vmatpush1.msra.mxu0 %v359
        %388 = vmatprep.subr.mxu0 0.0
        %389 = vmatpush1.msra.mxu0 %v360
        %390 = vmatprep.subr.mxu0 0.0
        %391 = vmatpush1.msra.mxu0 %v361
        %392 = vmatprep.subr.mxu0 0.0
        %393 = vmatpush1.msra.mxu0 %v362
        %394 = vmatprep.subr.mxu0 0.0
        %395 = vmatpush1.msra.mxu0 %v363
        %396 = vmatprep.subr.mxu0 0.0
        %397 = vmatpush1.msra.mxu0 0.0
        %398 = vmatprep.subr.mxu0 0.0
        %399 = vmatpush1.msra.mxu0 0.0
        %400 = vmatprep.subr.mxu0 0.0
        %401 = vmatpush1.msra.mxu0 0.0
        %402 = vmatprep.subr.mxu0 0.0
        %403 = vmatpush1.msra.mxu0 0.0
        %404 = vmatprep.subr.mxu0 0.0
        %405 = vmatpush1.msra.mxu0 0.0
        %406 = vmatprep.subr.mxu0 0.0
        %407 = vmatpush1.msra.mxu0 0.0
        %408 = vmatprep.subr.mxu0 0.0
        %409 = vmatpush1.msra.mxu0 0.0
        %410 = vmatprep.subr.mxu0 0.0
        %411 = vmatpush1.msra.mxu0 0.0
        %412 = vmatprep.subr.mxu0 0.0
        %413 = vmatpush1.msra.mxu0 0.0
        %414 = vmatprep.subr.mxu0 0.0
        %415 = vmatpush1.msra.mxu0 0.0
        %416 = vmatprep.subr.mxu0 0.0
        %417 = vmatpush1.msra.mxu0 0.0
        %418 = vmatprep.subr.mxu0 0.0
        %419 = vmatpush1.msra.mxu0 0.0
        %420 = vmatprep.subr.mxu0 0.0
        %421 = vmatpush1.msra.mxu0 0.0
        %422 = vmatprep.subr.mxu0 0.0
        %423 = vmatpush1.msra.mxu0 0.0
        %424 = vmatprep.subr.mxu0 0.0
        %425 = vmatpush1.msra.mxu0 0.0
        %426 = vmatprep.subr.mxu0 0.0
        %427 = vmatpush1.msra.mxu0 0.0
        %428 = vmatprep.mubr.f32.mxu0 0.0
        %429 = vmatmul.mubr.f32.gmra.mrb[0].mxu0 %v345
        %v430 = vpop.f32.mrb[0].mxu0
        %v431 = vadd.f32 0.0, %v430
        %v432 = vpop.f32.mrb[0].mxu0
        %433 = vdwg.mxu0
        %434 = vadd.xlane.f32.xlu0 %v431
        %v435 = vpop.xlane.xlu0 %434
        %v436 = vrcp.pop 128.0
        %v437 = vmul.f32 %v435, %v436
        %v438 = vsub.f32 %v431, %v437
        %v439 = vmul.f32 %v438, %v438
        %440 = vadd.xlane.f32.xlu0 %v439
        %v441 = vpop.xlane.xlu0 %440
        %v442 = vmul.f32 %v441, %v436
        %v443 = vadd.f32 %v442, 1e-05
        %v444 = vrsqrt.pop %v443
        %v445 = vmul.f32 %v438, %v444
        %v447 = vlaneseq
        %v448 = vshrl.u32 %v447, 7
        %v449 = vsub.s32 0, %v448
        %v450 = vrot.slane %v346, %v449
        %v452 = vmul.f32 %v445, %v450
        %v454 = vlaneseq
        %v455 = vshrl.u32 %v454, 7
        %v456 = vsub.s32 0, %v455
        %v457 = vrot.slane %v347, %v456
        %v459 = vadd.f32 %v452, %v457
        %v460 = vld [vmem:[%s4] sm:$0xff]
        %v461 = vld [vmem:[%s4 + $0x8] sm:$0xff]
        %v462 = vld [vmem:[%s4 + $0x10] sm:$0xff]
        %v463 = vld [vmem:[%s4 + $0x18] sm:$0xff]
        %v464 = vld [vmem:[%s4 + $0x20] sm:$0xff]
        %v465 = vld [vmem:[%s4 + $0x28] sm:$0xff]
        %v466 = vld [vmem:[%s4 + $0x30] sm:$0xff]
        %v467 = vld [vmem:[%s4 + $0x38] sm:$0xff]
        %v468 = vld [vmem:[%s4 + $0x40] sm:$0xff]
        %v469 = vld [vmem:[%s4 + $0x48] sm:$0xff]
        %v470 = vld [vmem:[%s4 + $0x50] sm:$0xff]
        %v471 = vld [vmem:[%s4 + $0x58] sm:$0xff]
        %v472 = vld [vmem:[%s4 + $0x60] sm:$0xff]
        %v473 = vld [vmem:[%s4 + $0x68] sm:$0xff]
        %v474 = vld [vmem:[%s4 + $0x70] sm:$0xff]
        %v475 = vld [vmem:[%s4 + $0x78] sm:$0xff]
        %476 = vmatprep.subr.mxu0 0.0
        %477 = vmatpush1.msra.mxu0 %v460
        %478 = vmatprep.subr.mxu0 0.0
        %479 = vmatpush1.msra.mxu0 %v461
        %480 = vmatprep.subr.mxu0 0.0
        %481 = vmatpush1.msra.mxu0 %v462
        %482 = vmatprep.subr.mxu0 0.0
        %483 = vmatpush1.msra.mxu0 %v463
        %484 = vmatprep.subr.mxu0 0.0
        %485 = vmatpush1.msra.mxu0 %v464
        %486 = vmatprep.subr.mxu0 0.0
        %487 = vmatpush1.msra.mxu0 %v465
        %488 = vmatprep.subr.mxu0 0.0
        %489 = vmatpush1.msra.mxu0 %v466
        %490 = vmatprep.subr.mxu0 0.0
        %491 = vmatpush1.msra.mxu0 %v467
        %492 = vmatprep.subr.mxu0 0.0
        %493 = vmatpush1.msra.mxu0 %v468
        %494 = vmatprep.subr.mxu0 0.0
        %495 = vmatpush1.msra.mxu0 %v469
        %496 = vmatprep.subr.mxu0 0.0
        %497 = vmatpush1.msra.mxu0 %v470
        %498 = vmatprep.subr.mxu0 0.0
        %499 = vmatpush1.msra.mxu0 %v471
        %500 = vmatprep.subr.mxu0 0.0
        %501 = vmatpush1.msra.mxu0 %v472
        %502 = vmatprep.subr.mxu0 0.0
        %503 = vmatpush1.msra.mxu0 %v473
        %504 = vmatprep.subr.mxu0 0.0
        %505 = vmatpush1.msra.mxu0 %v474
        %506 = vmatprep.subr.mxu0 0.0
        %507 = vmatpush1.msra.mxu0 %v475
        %508 = vmatprep.subr.mxu0 0.0
        %509 = vmatpush1.msra.mxu0 0.0
        %510 = vmatprep.subr.mxu0 0.0
        %511 = vmatpush1.msra.mxu0 0.0
        %512 = vmatprep.subr.mxu0 0.0
        %513 = vmatpush1.msra.mxu0 0.0
        %514 = vmatprep.subr.mxu0 0.0
        %515 = vmatpush1.msra.mxu0 0.0
        %516 = vmatprep.subr.mxu0 0.0
        %517 = vmatpush1.msra.mxu0 0.0
        %518 = vmatprep.subr.mxu0 0.0
        %519 = vmatpush1.msra.mxu0 0.0
        %520 = vmatprep.subr.mxu0 0.0
        %521 = vmatpush1.msra.mxu0 0.0
        %522 = vmatprep.subr.mxu0 0.0
        %523 = vmatpush1.msra.mxu0 0.0
        %524 = vmatprep.subr.mxu0 0.0
        %525 = vmatpush1.msra.mxu0 0.0
        %526 = vmatprep.subr.mxu0 0.0
        %527 = vmatpush1.msra.mxu0 0.0
        %528 = vmatprep.subr.mxu0 0.0
        %529 = vmatpush1.msra.mxu0 0.0
        %530 = vmatprep.subr.mxu0 0.0
        %531 = vmatpush1.msra.mxu0 0.0
        %532 = vmatprep.subr.mxu0 0.0
        %533 = vmatpush1.msra.mxu0 0.0
        %534 = vmatprep.subr.mxu0 0.0
        %535 = vmatpush1.msra.mxu0 0.0
        %536 = vmatprep.subr.mxu0 0.0
        %537 = vmatpush1.msra.mxu0 0.0
        %538 = vmatprep.subr.mxu0 0.0
        %539 = vmatpush1.msra.mxu0 0.0
        %540 = vmatprep.mubr.f32.mxu0 0.0
        %541 = vmatmul.mubr.f32.gmra.mrb[0].mxu0 %v459
        %v542 = vpop.f32.mrb[0].mxu0
        %v543 = vadd.f32 0.0, %v542
        %v544 = vpop.f32.mrb[0].mxu0
        %545 = vdwg.mxu0
        %v546 = vmul.f32 %v543, 0.5
        %v547 = vmul.f32 %v543, 0.044715
        %v548 = vmul.f32 %v547, %v543
        %v549 = vmul.f32 %v548, %v543
        %v550 = vadd.f32 %v543, %v549
        %v551 = vmul.f32 %v550, 0.7978846
        %v552 = vtanh.pop %v551
        %v553 = vadd.f32 %v552, 1.0
        %v554 = vmul.f32 %v546, %v553
        %v555 = vld [vmem:[#allocation2] sm:$0xff]
        %v556 = vld [vmem:[#allocation2 + $0x8] sm:$0xff]
        %v557 = vld [vmem:[#allocation2 + $0x10] sm:$0xff]
        %v558 = vld [vmem:[#allocation2 + $0x18] sm:$0xff]
        %v559 = vld [vmem:[#allocation2 + $0x20] sm:$0xff]
        %v560 = vld [vmem:[#allocation2 + $0x28] sm:$0xff]
        %v561 = vld [vmem:[#allocation2 + $0x30] sm:$0xff]
        %v562 = vld [vmem:[#allocation2 + $0x38] sm:$0xff]
        %v563 = vld [vmem:[#allocation2 + $0x40] sm:$0xff]
        %v564 = vld [vmem:[#allocation2 + $0x48] sm:$0xff]
        %v565 = vld [vmem:[#allocation2 + $0x50] sm:$0xff]
        %v566 = vld [vmem:[#allocation2 + $0x58] sm:$0xff]
        %v567 = vld [vmem:[#allocation2 + $0x60] sm:$0xff]
        %v568 = vld [vmem:[#allocation2 + $0x68] sm:$0xff]
        %v569 = vld [vmem:[#allocation2 + $0x70] sm:$0xff]
        %v570 = vld [vmem:[#allocation2 + $0x78] sm:$0xff]
        %571 = vmatprep.subr.mxu0 0.0
        %572 = vmatpush1.msra.mxu0 %v555
        %573 = vmatprep.subr.mxu0 0.0
        %574 = vmatpush1.msra.mxu0 %v556
        %575 = vmatprep.subr.mxu0 0.0
        %576 = vmatpush1.msra.mxu0 %v557
        %577 = vmatprep.subr.mxu0 0.0
        %578 = vmatpush1.msra.mxu0 %v558
        %579 = vmatprep.subr.mxu0 0.0
        %580 = vmatpush1.msra.mxu0 %v559
        %581 = vmatprep.subr.mxu0 0.0
        %582 = vmatpush1.msra.mxu0 %v560
        %583 = vmatprep.subr.mxu0 0.0
        %584 = vmatpush1.msra.mxu0 %v561
        %585 = vmatprep.subr.mxu0 0.0
        %586 = vmatpush1.msra.mxu0 %v562
        %587 = vmatprep.subr.mxu0 0.0
        %588 = vmatpush1.msra.mxu0 %v563
        %589 = vmatprep.subr.mxu0 0.0
        %590 = vmatpush1.msra.mxu0 %v564
        %591 = vmatprep.subr.mxu0 0.0
        %592 = vmatpush1.msra.mxu0 %v565
        %593 = vmatprep.subr.mxu0 0.0
        %594 = vmatpush1.msra.mxu0 %v566
        %595 = vmatprep.subr.mxu0 0.0
        %596 = vmatpush1.msra.mxu0 %v567
        %597 = vmatprep.subr.mxu0 0.0
        %598 = vmatpush1.msra.mxu0 %v568
        %599 = vmatprep.subr.mxu0 0.0
        %600 = vmatpush1.msra.mxu0 %v569
        %601 = vmatprep.subr.mxu0 0.0
        %602 = vmatpush1.msra.mxu0 %v570
        %603 = vmatprep.subr.mxu0 0.0
        %604 = vmatpush1.msra.mxu0 0.0
        %605 = vmatprep.subr.mxu0 0.0
        %606 = vmatpush1.msra.mxu0 0.0
        %607 = vmatprep.subr.mxu0 0.0
        %608 = vmatpush1.msra.mxu0 0.0
        %609 = vmatprep.subr.mxu0 0.0
        %610 = vmatpush1.msra.mxu0 0.0
        %611 = vmatprep.subr.mxu0 0.0
        %612 = vmatpush1.msra.mxu0 0.0
        %613 = vmatprep.subr.mxu0 0.0
        %614 = vmatpush1.msra.mxu0 0.0
        %615 = vmatprep.subr.mxu0 0.0
        %616 = vmatpush1.msra.mxu0 0.0
        %617 = vmatprep.subr.mxu0 0.0
        %618 = vmatpush1.msra.mxu0 0.0
        %619 = vmatprep.subr.mxu0 0.0
        %620 = vmatpush1.msra.mxu0 0.0
        %621 = vmatprep.subr.mxu0 0.0
        %622 = vmatpush1.msra.mxu0 0.0
        %623 = vmatprep.subr.mxu0 0.0
        %624 = vmatpush1.msra.mxu0 0.0
        %625 = vmatprep.subr.mxu0 0.0
        %626 = vmatpush1.msra.mxu0 0.0
        %627 = vmatprep.subr.mxu0 0.0
        %628 = vmatpush1.msra.mxu0 0.0
        %629 = vmatprep.subr.mxu0 0.0
        %630 = vmatpush1.msra.mxu0 0.0
        %631 = vmatprep.subr.mxu0 0.0
        %632 = vmatpush1.msra.mxu0 0.0
        %633 = vmatprep.subr.mxu0 0.0
        %634 = vmatpush1.msra.mxu0 0.0
        %635 = vmatprep.mubr.f32.mxu0 0.0
        %636 = vmatmul.mubr.f32.gmra.mrb[0].mxu0 %v554
        %v637 = vpop.f32.mrb[0].mxu0
        %v638 = vadd.f32 0.0, %v637
        %v639 = vpop.f32.mrb[0].mxu0
        %640 = vdwg.mxu0
        %641 = vadd.xlane.f32.xlu0 %v638
        %v642 = vpop.xlane.xlu0 %641
        %v643 = vmul.f32 %v642, %v436
        %v644 = vsub.f32 %v638, %v643
        %v645 = vmul.f32 %v644, %v644
        %646 = vadd.xlane.f32.xlu0 %v645
        %v647 = vpop.xlane.xlu0 %646
        %v648 = vmul.f32 %v647, %v436
        %v649 = vadd.f32 %v648, 1e-05
        %v650 = vrsqrt.pop %v649
        %v651 = vmul.f32 %v644, %v650
        %v652 = vmul.f32 %v651, %v450
        %v653 = vadd.f32 %v652, %v457
        %v654 = vld [vmem:[#allocation4] sm:$0xff]
        %v655 = vld [vmem:[#allocation4 + $0x8] sm:$0xff]
        %v656 = vld [vmem:[#allocation4 + $0x10] sm:$0xff]
        %v657 = vld [vmem:[#allocation4 + $0x18] sm:$0xff]
        %v658 = vld [vmem:[#allocation4 + $0x20] sm:$0xff]
        %v659 = vld [vmem:[#allocation4 + $0x28] sm:$0xff]
        %v660 = vld [vmem:[#allocation4 + $0x30] sm:$0xff]
        %v661 = vld [vmem:[#allocation4 + $0x38] sm:$0xff]
        %v662 = vld [vmem:[#allocation4 + $0x40] sm:$0xff]
        %v663 = vld [vmem:[#allocation4 + $0x48] sm:$0xff]
        %v664 = vld [vmem:[#allocation4 + $0x50] sm:$0xff]
        %v665 = vld [vmem:[#allocation4 + $0x58] sm:$0xff]
        %v666 = vld [vmem:[#allocation4 + $0x60] sm:$0xff]
        %v667 = vld [vmem:[#allocation4 + $0x68] sm:$0xff]
        %v668 = vld [vmem:[#allocation4 + $0x70] sm:$0xff]
        %v669 = vld [vmem:[#allocation4 + $0x78] sm:$0xff]
        %670 = vmatprep.subr.mxu0 0.0
        %671 = vmatpush1.msra.mxu0 %v654
        %672 = vmatprep.subr.mxu0 0.0
        %673 = vmatpush1.msra.mxu0 %v655
        %674 = vmatprep.subr.mxu0 0.0
        %675 = vmatpush1.msra.mxu0 %v656
        %676 = vmatprep.subr.mxu0 0.0
        %677 = vmatpush1.msra.mxu0 %v657
        %678 = vmatprep.subr.mxu0 0.0
        %679 = vmatpush1.msra.mxu0 %v658
        %680 = vmatprep.subr.mxu0 0.0
        %681 = vmatpush1.msra.mxu0 %v659
        %682 = vmatprep.subr.mxu0 0.0
        %683 = vmatpush1.msra.mxu0 %v660
        %684 = vmatprep.subr.mxu0 0.0
        %685 = vmatpush1.msra.mxu0 %v661
        %686 = vmatprep.subr.mxu0 0.0
        %687 = vmatpush1.msra.mxu0 %v662
        %688 = vmatprep.subr.mxu0 0.0
        %689 = vmatpush1.msra.mxu0 %v663
        %690 = vmatprep.subr.mxu0 0.0
        %691 = vmatpush1.msra.mxu0 %v664
        %692 = vmatprep.subr.mxu0 0.0
        %693 = vmatpush1.msra.mxu0 %v665
        %694 = vmatprep.subr.mxu0 0.0
        %695 = vmatpush1.msra.mxu0 %v666
        %696 = vmatprep.subr.mxu0 0.0
        %697 = vmatpush1.msra.mxu0 %v667
        %698 = vmatprep.subr.mxu0 0.0
        %699 = vmatpush1.msra.mxu0 %v668
        %700 = vmatprep.subr.mxu0 0.0
        %701 = vmatpush1.msra.mxu0 %v669
        %702 = vmatprep.subr.mxu0 0.0
        %703 = vmatpush1.msra.mxu0 0.0
        %704 = vmatprep.subr.mxu0 0.0
        %705 = vmatpush1.msra.mxu0 0.0
        %706 = vmatprep.subr.mxu0 0.0
        %707 = vmatpush1.msra.mxu0 0.0
        %708 = vmatprep.subr.mxu0 0.0
        %709 = vmatpush1.msra.mxu0 0.0
        %710 = vmatprep.subr.mxu0 0.0
        %711 = vmatpush1.msra.mxu0 0.0
        %712 = vmatprep.subr.mxu0 0.0
        %713 = vmatpush1.msra.mxu0 0.0
        %714 = vmatprep.subr.mxu0 0.0
        %715 = vmatpush1.msra.mxu0 0.0
        %716 = vmatprep.subr.mxu0 0.0
        %717 = vmatpush1.msra.mxu0 0.0
        %718 = vmatprep.subr.mxu0 0.0
        %719 = vmatpush1.msra.mxu0 0.0
        %720 = vmatprep.subr.mxu0 0.0
        %721 = vmatpush1.msra.mxu0 0.0
        %722 = vmatprep.subr.mxu0 0.0
        %723 = vmatpush1.msra.mxu0 0.0
        %724 = vmatprep.subr.mxu0 0.0
        %725 = vmatpush1.msra.mxu0 0.0
        %726 = vmatprep.subr.mxu0 0.0
        %727 = vmatpush1.msra.mxu0 0.0
        %728 = vmatprep.subr.mxu0 0.0
        %729 = vmatpush1.msra.mxu0 0.0
        %730 = vmatprep.subr.mxu0 0.0
        %731 = vmatpush1.msra.mxu0 0.0
        %732 = vmatprep.subr.mxu0 0.0
        %733 = vmatpush1.msra.mxu0 0.0
        %734 = vmatprep.mubr.f32.mxu0 0.0
        %735 = vmatmul.mubr.f32.gmra.mrb[0].mxu0 %v653
        %v736 = vpop.f32.mrb[0].mxu0
        %v737 = vadd.f32 0.0, %v736
        %v738 = vpop.f32.mrb[0].mxu0
        %739 = vdwg.mxu0
        %v740 = vmul.f32 %v737, 0.5
        %v741 = vmul.f32 %v737, 0.044715
        %v742 = vmul.f32 %v741, %v737
        %v743 = vmul.f32 %v742, %v737
        %v744 = vadd.f32 %v737, %v743
        %v745 = vmul.f32 %v744, 0.7978846
        %v746 = vtanh.pop %v745
        %v747 = vadd.f32 %v746, 1.0
        %v748 = vmul.f32 %v740, %v747
        %v749 = vld [vmem:[#allocation6] sm:$0xff]
        %v750 = vld [vmem:[#allocation6 + $0x8] sm:$0xff]
        %v751 = vld [vmem:[#allocation6 + $0x10] sm:$0xff]
        %v752 = vld [vmem:[#allocation6 + $0x18] sm:$0xff]
        %v753 = vld [vmem:[#allocation6 + $0x20] sm:$0xff]
        %v754 = vld [vmem:[#allocation6 + $0x28] sm:$0xff]
        %v755 = vld [vmem:[#allocation6 + $0x30] sm:$0xff]
        %v756 = vld [vmem:[#allocation6 + $0x38] sm:$0xff]
        %v757 = vld [vmem:[#allocation6 + $0x40] sm:$0xff]
        %v758 = vld [vmem:[#allocation6 + $0x48] sm:$0xff]
        %v759 = vld [vmem:[#allocation6 + $0x50] sm:$0xff]
        %v760 = vld [vmem:[#allocation6 + $0x58] sm:$0xff]
        %v761 = vld [vmem:[#allocation6 + $0x60] sm:$0xff]
        %v762 = vld [vmem:[#allocation6 + $0x68] sm:$0xff]
        %v763 = vld [vmem:[#allocation6 + $0x70] sm:$0xff]
        %v764 = vld [vmem:[#allocation6 + $0x78] sm:$0xff]
        %765 = vmatprep.subr.mxu0 0.0
        %766 = vmatpush1.msra.mxu0 %v749
        %767 = vmatprep.subr.mxu0 0.0
        %768 = vmatpush1.msra.mxu0 %v750
        %769 = vmatprep.subr.mxu0 0.0
        %770 = vmatpush1.msra.mxu0 %v751
        %771 = vmatprep.subr.mxu0 0.0
        %772 = vmatpush1.msra.mxu0 %v752
        %773 = vmatprep.subr.mxu0 0.0
        %774 = vmatpush1.msra.mxu0 %v753
        %775 = vmatprep.subr.mxu0 0.0
        %776 = vmatpush1.msra.mxu0 %v754
        %777 = vmatprep.subr.mxu0 0.0
        %778 = vmatpush1.msra.mxu0 %v755
        %779 = vmatprep.subr.mxu0 0.0
        %780 = vmatpush1.msra.mxu0 %v756
        %781 = vmatprep.subr.mxu0 0.0
        %782 = vmatpush1.msra.mxu0 %v757
        %783 = vmatprep.subr.mxu0 0.0
        %784 = vmatpush1.msra.mxu0 %v758
        %785 = vmatprep.subr.mxu0 0.0
        %786 = vmatpush1.msra.mxu0 %v759
        %787 = vmatprep.subr.mxu0 0.0
        %788 = vmatpush1.msra.mxu0 %v760
        %789 = vmatprep.subr.mxu0 0.0
        %790 = vmatpush1.msra.mxu0 %v761
        %791 = vmatprep.subr.mxu0 0.0
        %792 = vmatpush1.msra.mxu0 %v762
        %793 = vmatprep.subr.mxu0 0.0
        %794 = vmatpush1.msra.mxu0 %v763
        %795 = vmatprep.subr.mxu0 0.0
        %796 = vmatpush1.msra.mxu0 %v764
        %797 = vmatprep.subr.mxu0 0.0
        %798 = vmatpush1.msra.mxu0 0.0
        %799 = vmatprep.subr.mxu0 0.0
        %800 = vmatpush1.msra.mxu0 0.0
        %801 = vmatprep.subr.mxu0 0.0
        %802 = vmatpush1.msra.mxu0 0.0
        %803 = vmatprep.subr.mxu0 0.0
        %804 = vmatpush1.msra.mxu0 0.0
        %805 = vmatprep.subr.mxu0 0.0
        %806 = vmatpush1.msra.mxu0 0.0
        %807 = vmatprep.subr.mxu0 0.0
        %808 = vmatpush1.msra.mxu0 0.0
        %809 = vmatprep.subr.mxu0 0.0
        %810 = vmatpush1.msra.mxu0 0.0
        %811 = vmatprep.subr.mxu0 0.0
        %812 = vmatpush1.msra.mxu0 0.0
        %813 = vmatprep.subr.mxu0 0.0
        %814 = vmatpush1.msra.mxu0 0.0
        %815 = vmatprep.subr.mxu0 0.0
        %816 = vmatpush1.msra.mxu0 0.0
        %817 = vmatprep.subr.mxu0 0.0
        %818 = vmatpush1.msra.mxu0 0.0
        %819 = vmatprep.subr.mxu0 0.0
        %820 = vmatpush1.msra.mxu0 0.0
        %821 = vmatprep.subr.mxu0 0.0
        %822 = vmatpush1.msra.mxu0 0.0
        %823 = vmatprep.subr.mxu0 0.0
        %824 = vmatpush1.msra.mxu0 0.0
        %825 = vmatprep.subr.mxu0 0.0
        %826 = vmatpush1.msra.mxu0 0.0
        %827 = vmatprep.subr.mxu0 0.0
        %828 = vmatpush1.msra.mxu0 0.0
        %829 = vmatprep.mubr.f32.mxu0 0.0
        %830 = vmatmul.mubr.f32.gmra.mrb[0].mxu0 %v748
        %v831 = vpop.f32.mrb[0].mxu0
        %v832 = vadd.f32 0.0, %v831
        %v833 = vpop.f32.mrb[0].mxu0
        %834 = vdwg.mxu0
        %835 = vst [vmem:[%s344] sm:$0xff] %v832
        %p836 = scmp.lt.s32.totalorder %s21, 1
        %s837 = scalar_select %p836, %s21, 1
        %s838 = smul.addr %s837, 8
        %s839 = scalar_lea.vmem %s8, %s838
        // Predicated region
        $region65: #{fnet_forward.3} parent=51 // pred_check
          %p840 = pneg %p212
        $region66: #{fnet_forward.3} parent=51 // pred_check_branch
          %842 = sbr.rel (%p840) target = $region68
        $region67: #{fnet_forward.3} parent=51 // pred_region
          _
        $region68: #{fnet_forward.3} parent=51 // pred_fallthru
          _
      $region52: #{fnet_forward.3} parent=5 // pred_fallthru
        _
      %p843 = scmp.le.s32.totalorder 2, %s16
      // Predicated region
      $region69: #{fnet_forward.3} parent=5 // pred_check
        %p844 = pneg %p843
      $region70: #{fnet_forward.3} parent=5 // pred_check_branch
        %846 = sbr.rel (%p844) target = $region72
      $region71: #{fnet_forward.3} parent=5 // pred_region
        %s847 = ssub.s32 %s16, 2
        // Predicated region
        $region73: #{fnet_forward.3} parent=71 // pred_check
          %p848 = pneg %p218
        $region74: #{fnet_forward.3} parent=71 // pred_check_branch
          %850 = sbr.rel (%p848) target = $region76
        $region75: #{fnet_forward.3} parent=71 // pred_region
          %p851 = scmp.lt.s32.totalorder %s22, 1
          %s852 = scalar_select %p851, %s22, 1
          %s853 = smul.addr %s852, 8
          %s854 = scalar_lea.vmem %s8, %s853
        $region76: #{fnet_forward.3} parent=71 // pred_fallthru
          _
      $region72: #{fnet_forward.3} parent=5 // pred_fallthru
        _
    $region6: #{fnet_forward.3} parent=1 // loop_footer
      %s20 = sadd.s32 1, %s16
    $region7: #{fnet_forward.3} parent=1 // loop_footer_branch
      %15 = sbr.rel target = $region3
    $region8: #{fnet_forward.3} parent=1 // loop_exit
      _
    %855 = vsyncpa [#allocation3], 1
    %s856 = scalar_lea.sflag [#allocation3], 1
    %857 = vsyncpa %s856, 1
    %858 = vsyncpa [#allocation5], 1

</llo_original>
